<compile_context>
chip_gen: v7x
topology: tpu7x:2x2x1
jax: 0.10.0
libtpu: 0.0.40
codegen_flags: <defaults>
</compile_context>

<pallas_src>
import numpy as np
import jax
import jax.numpy as jnp
from jax import lax
from jax.experimental import pallas as pl
from jax.experimental.pallas import tpu as pltpu

# ---------------- small LTAE2dPastis configuration ----------------
IN_CHANNELS = 4             # d : input embedding channels
PATCH_SIZE  = 4
N_HEAD      = 4
D_K         = 4
MLP_IN      = [8, 16, 32]   # inconv widths; d_model = MLP_IN[-1]
MLP         = [48, 32]      # output MLP widths (MLP[-1] % N_HEAD == 0)
T_PERIOD    = 1000.0
EPS_GN      = 1e-5
EPS_BN      = 1e-5

D_IN        = IN_CHANNELS * PATCH_SIZE * PATCH_SIZE   # 64 : first Linear input width
D_MODEL     = MLP_IN[-1]                              # 32
D_G         = D_MODEL // N_HEAD                       # 8  : per-head value width / group width
D_PE        = D_MODEL // N_HEAD                       # 8  : positional-encoder base width
C_OUT       = MLP[-1]                                 # 32
G_OUT       = C_OUT // N_HEAD                         # 8  : out_norm group width
TEMPERATURE = float(np.power(D_K, 0.5))


def _round_up(a, b):
    return ((a + b - 1) // b) * b


# ---------------- parameter slab layout (two resident VMEM operands) ----------------
def _build_param_layout():
    # weight slab rows: each entry (row_start, out_dim E, in_dim D), 8-aligned row starts
    w_specs = [('w0', MLP_IN[0], D_IN), ('w1', MLP_IN[1], MLP_IN[0]),
               ('w2', MLP_IN[2], MLP_IN[1]),
               ('qwk', N_HEAD, D_MODEL),           # folded (Q @ Wk) / temperature
               ('wm0', MLP[0], D_MODEL), ('wm1', MLP[1], MLP[0]),
               ('pool', N_HEAD, D_MODEL),          # constant per-head pooling matrix
               ('expand', D_MODEL, N_HEAD),        # constant per-head expansion matrix
               ('pool_o', N_HEAD, C_OUT),          # same, for out_norm channel count
               ('expand_o', C_OUT, N_HEAD)]
    w_off, r = {}, 0
    for name, e, d in w_specs:
        w_off[name] = (r, e, d)
        r += _round_up(e, 8)
    w_rows = r
    # bias / affine column slab
    v_specs = [('c0', MLP_IN[0]), ('c1', MLP_IN[1]), ('c2', MLP_IN[2]),
               ('gin', D_MODEL), ('bin', D_MODEL), ('qb', N_HEAD),
               ('cm0', MLP[0]), ('cm1', MLP[1]), ('gout', C_OUT), ('bout', C_OUT)]
    v_off, r = {}, 0
    for name, l in v_specs:
        v_off[name] = (r, l)
        r += _round_up(l, 8)
    return w_off, w_rows, v_off, r


W_OFF, W_ROWS, V_OFF, V_ROWS = _build_param_layout()
W_COLS = D_IN   # widest input dim among the stacked weights (64)


# ---------------- kernel ----------------
def ltae2d_pastis_kernel(x_ref, pe_ref, oh_ref, w_ref, v_ref, o_ref, y_scr, pe_scr):
    # x_ref : (T, D_IN, TILE_N) bf16 patch features, pixels on lanes
    # pe_ref: (T, D_MODEL, B_pad) per-batch positional encodings (precomputed outside)
    # oh_ref: (B_pad, TILE_N) one-hot batch membership of each patch row
    # w_ref : (W_ROWS, W_COLS) stacked folded weight matrices + constant pool/expand matrices
    # v_ref : (V_ROWS, 1) stacked bias / affine column vectors
    # o_ref : (C_OUT, TILE_N)
    # y_scr : (T, D_MODEL, TILE_N) f32 scratch - inconv outputs (never rewritten)
    # pe_scr: (T, D_MODEL, TILE_N) f32 scratch - PE(+GroupNorm shift) per patch
    seq_len = x_ref.shape[0]
    nt = o_ref.shape[-1]

    def wmat(name):
        r, e, d = W_OFF[name]
        return w_ref[r:r + e, 0:d]

    def vcol(name):
        r, l = V_OFF[name]
        return v_ref[r:r + l, :]

    w0, c0 = wmat('w0'), vcol('c0')
    w1, c1 = wmat('w1'), vcol('c1')
    w2, c2 = wmat('w2'), vcol('c2')
    gin, bin_ = vcol('gin'), vcol('bin')
    qwk, qb = wmat('qwk'), vcol('qb')          # folded key+query (+1/temperature)
    wm0, cm0 = wmat('wm0'), vcol('cm0')
    wm1, cm1 = wmat('wm1'), vcol('cm1')
    gout, bout = vcol('gout'), vcol('bout')
    pool = wmat('pool')                        # (N_HEAD, D_MODEL) block of ones
    expand = wmat('expand')                    # (D_MODEL, N_HEAD) = pool^T
    pool_o = wmat('pool_o')                    # (N_HEAD, C_OUT)
    expand_o = wmat('expand_o')                # (C_OUT, N_HEAD)

    # ---- pass 1: shared inconv MLP per time step (Linear+BN folded, ReLU); single-pass
    #      GroupNorm statistics via pooling matmuls on the idle MXU ----
    def p1_body(t, carry):
        s1, s2 = carry
        xt = x_ref[t].astype(jnp.float32)                                      # (D_IN, nt)
        h = jnp.maximum(jnp.dot(w0, xt, preferred_element_type=jnp.float32) + c0, 0.0)
        h = jnp.maximum(jnp.dot(w1, h, preferred_element_type=jnp.float32) + c1, 0.0)
        y = jnp.maximum(jnp.dot(w2, h, preferred_element_type=jnp.float32) + c2, 0.0)
        y_scr[t] = y                                                           # (D_MODEL, nt)
        s1 = s1 + jnp.dot(pool, y, preferred_element_type=jnp.float32)         # (N_HEAD, nt)
        s2 = s2 + jnp.dot(pool, y * y, preferred_element_type=jnp.float32)
        return s1, s2

    zeros_h = jnp.zeros((N_HEAD, nt), jnp.float32)
    s1, s2 = lax.fori_loop(0, seq_len, p1_body, (zeros_h, zeros_h))

    # in_norm (GroupNorm over D_G channels x T) -- single-pass variance, clamped at 0.
    inv_cnt = 1.0 / float(seq_len * D_G)
    mean = s1 * inv_cnt                                                        # (N_HEAD, nt)
    var = jnp.maximum(s2 * inv_cnt - mean * mean, 0.0)
    rstd = lax.rsqrt(var + EPS_GN)
    # expand per-head stats to (D_MODEL, nt) with the MXU and fold the GroupNorm affine:
    #   v_t = y_t * scale_full + shift_full + pe_t
    scale_full = jnp.dot(expand, rstd, preferred_element_type=jnp.float32) * gin
    shift_full = bin_ - jnp.dot(expand, mean, preferred_element_type=jnp.float32) * scale_full

    # ---- PE setup (hoisted out of the attention loop): one small matmul per step on the idle
    #      MXU, with the GroupNorm shift folded into the scratch so the hot loop below only
    #      needs a single fma per element ----
    oh = oh_ref[...]                                                           # (B_pad, nt)

    @pl.loop(0, seq_len)
    def _(t):
        pe_scr[t] = (jnp.dot(pe_ref[t], oh, preferred_element_type=jnp.float32)
                     + shift_full)

    # ---- pass 2 (fused with pass 3): value build + folded key/query scores + online softmax
    #      + attention-weighted sum, in one bounded fori_loop.  Per-head weights are expanded
    #      to (D_MODEL, nt) with tiny MXU matmuls instead of sublane broadcasts/concats. ----
    def p2_body(t, carry):
        m, l, acc = carry
        vt = y_scr[t] * scale_full + pe_scr[t]                                 # (D_MODEL, nt)
        s = jnp.dot(qwk, vt, preferred_element_type=jnp.float32) + qb          # (N_HEAD, nt)
        m_new = jnp.maximum(m, s)
        alpha = jnp.exp(m - m_new)                                             # EUP
        p = jnp.exp(s - m_new)                                                 # EUP
        l = alpha * l + p
        af = jnp.dot(expand, alpha, preferred_element_type=jnp.float32)        # (D_MODEL, nt)
        pf = jnp.dot(expand, p, preferred_element_type=jnp.float32)
        acc = af * acc + pf * vt
        return m_new, l, acc

    m0 = jnp.full((N_HEAD, nt), -jnp.inf, dtype=jnp.float32)
    l0 = jnp.zeros((N_HEAD, nt), jnp.float32)
    a0 = jnp.zeros((D_MODEL, nt), jnp.float32)
    _, l, acc = lax.fori_loop(0, seq_len, p2_body, (m0, l0, a0))

    # softmax denominator on the EUP + one Newton step for accuracy
    inv_l = pl.reciprocal(l, approx=True)
    inv_l = inv_l * (2.0 - l * inv_l)
    z = acc * jnp.dot(expand, inv_l, preferred_element_type=jnp.float32)       # (D_MODEL, nt)

    # ---- output MLP (Linear+BN folded, ReLU) ----
    g = jnp.maximum(jnp.dot(wm0, z, preferred_element_type=jnp.float32) + cm0, 0.0)
    g = jnp.maximum(jnp.dot(wm1, g, preferred_element_type=jnp.float32) + cm1, 0.0)

    # ---- out_norm: GroupNorm over channel groups per pixel (two-pass, cheap: no T loop),
    #      head-wise stats again via pooling / expansion matmuls ----
    go_inv = 1.0 / float(G_OUT)
    mu = jnp.dot(pool_o, g, preferred_element_type=jnp.float32) * go_inv       # (N_HEAD, nt)
    dev = g - jnp.dot(expand_o, mu, preferred_element_type=jnp.float32)
    var_o = jnp.dot(pool_o, dev * dev, preferred_element_type=jnp.float32) * go_inv
    rstd_o = lax.rsqrt(var_o + EPS_GN)
    zn = dev * jnp.dot(expand_o, rstd_o, preferred_element_type=jnp.float32)   # (C_OUT, nt)
    o_ref[...] = (zn * gout + bout).astype(o_ref.dtype)


# ---------------- wrapper ----------------
def positional_encoding(batch_positions):
    """PositionalEncoder(d=D_MODEL//N_HEAD, T=T_PERIOD, repeat=N_HEAD): (B, T) -> (B, T, D_MODEL)."""
    j = np.arange(D_PE)
    denom = np.power(T_PERIOD, 2.0 * (j // 2) / D_PE).astype(np.float32)
    ang = batch_positions[:, :, None] / denom[None, None, :]
    pe = jnp.where(jnp.asarray(j % 2 == 0)[None, None, :], jnp.sin(ang), jnp.cos(ang))
    return jnp.tile(pe, (1, 1, N_HEAD))


def ltae2d_pastis_forward(x, batch_positions, params, *, tile_n=512):
    """x: (B, T, D, H, W) float32; batch_positions: (B, T) float32.

    Returns (B, num_patches, C_OUT) -- same ordering as the torch module's final
    view/permute chain.  tile_n (multiple of 128) is the number of patch rows per grid step;
    512 keeps the fused pass-2 working set near the 64-vreg budget while still amortizing the
    per-grid-step overhead, and its VMEM footprint fits v7x (64 MiB) and v5e at realistic T.
    For v7x megacore keep N/tile_n >= 2 (and preferably even) when N allows it.
    """
    B, T, D, H, W = x.shape
    assert D == IN_CHANNELS
    assert H % PATCH_SIZE == 0 and W % PATCH_SIZE == 0
    assert tile_n % 128 == 0
    ps = PATCH_SIZE
    gh, gw = H // ps, W // ps
    num_patches = gh * gw
    N = B * num_patches
    tile_n = max(128, min(tile_n, _round_up(N, 128)))   # don't over-pad tiny problems
    n_pad = _round_up(N, tile_n)
    b_pad = _round_up(B, 8)

    # Patch unfold, identical to torch:
    #   x.unfold(3,ps,ps).unfold(4,ps,ps).flatten(3,4).flatten(4,5)
    #    .permute(0,3,1,2,4).flatten(3,4).flatten(0,1)
    xp = x.reshape(B, T, D, gh, ps, gw, ps)
    xp = jnp.transpose(xp, (0, 3, 5, 1, 2, 4, 6)).reshape(N, T, D_IN)
    # pixels-on-lanes layout (T, D_IN, N); stream from HBM as bf16 (matmul math stays f32)
    xT = jnp.transpose(xp, (1, 2, 0)).astype(jnp.bfloat16)
    xT = jnp.pad(xT, ((0, 0), (0, 0), (0, n_pad - N)))

    # Positional encoding hoisted out of the kernel (depends only on (batch element, t)).
    pe = positional_encoding(batch_positions.astype(jnp.float32))              # (B, T, D_MODEL)
    peT = jnp.transpose(pe, (1, 2, 0))                                          # (T, D_MODEL, B)
    peT = jnp.pad(peT, ((0, 0), (0, 0), (0, b_pad - B)))

    # One-hot batch membership of every (padded) patch row -- lets the kernel rebuild the
    # per-patch PE with a tiny matmul instead of reading an N-sized broadcast from HBM.
    bidx = jnp.repeat(jnp.arange(B, dtype=jnp.int32), num_patches)
    bidx = jnp.pad(bidx, (0, n_pad - N), constant_values=0)
    onehot = (bidx[None, :] == jnp.arange(b_pad, dtype=jnp.int32)[:, None]).astype(jnp.float32)

    out = pl.pallas_call(
        ltae2d_pastis_kernel,
        out_shape=jax.ShapeDtypeStruct((C_OUT, n_pad), jnp.float32),
        grid=(n_pad // tile_n,),
        in_specs=[
            pl.BlockSpec((T, D_IN, tile_n), lambda i: (0, 0, i)),
            pl.BlockSpec((T, D_MODEL, b_pad), lambda i: (0, 0, 0)),
            pl.BlockSpec((b_pad, tile_n), lambda i: (0, i)),
            pl.BlockSpec((W_ROWS, W_COLS), lambda i: (0, 0)),
            pl.BlockSpec((V_ROWS, 1), lambda i: (0, 0)),
        ],
        out_specs=pl.BlockSpec((C_OUT, tile_n), lambda i: (0, i)),
        scratch_shapes=[pltpu.VMEM((T, D_MODEL, tile_n), jnp.float32),
                        pltpu.VMEM((T, D_MODEL, tile_n), jnp.float32)],
        compiler_params=pltpu.CompilerParams(
            dimension_semantics=("parallel",),
            vmem_limit_bytes=32 * 1024 * 1024),
    )(xT, peT, onehot, params['wslab'], params['vslab'])

    out = out[:, :N]                                                            # (C_OUT, N)
    # torch: view(B, gh, gw, C).permute(0,3,1,2).flatten(2,3).permute(0,2,1) == (B, P, C)
    return jnp.transpose(out, (1, 0)).reshape(B, num_patches, C_OUT)


# ---------------- parameter construction (random, eval-mode BN folded) ----------------
def make_params(key):
    ks = iter(jax.random.split(key, 64))

    def nrm(shape, std=0.1):
        return np.asarray(std * jax.random.normal(next(ks), shape, dtype=jnp.float32))

    def uni(shape, lo, hi):
        return np.asarray(jax.random.uniform(next(ks), shape, dtype=jnp.float32,
                                             minval=lo, maxval=hi))

    def fold_linear_bn(din, dout):
        # Linear(din, dout) followed by eval-mode BatchNorm1d(dout), folded into one affine.
        w = nrm((dout, din), std=float(np.sqrt(2.0 / din)))     # torch (out, in) layout
        b = nrm((dout,), std=0.05)
        gamma = uni((dout,), 0.5, 1.5)
        beta = nrm((dout,), std=0.05)
        rmean = nrm((dout,), std=0.05)
        rvar = uni((dout,), 0.5, 1.5)
        scale = gamma / np.sqrt(rvar + EPS_BN)
        return w * scale[:, None], (b - rmean) * scale + beta

    weights, vecs = {}, {}
    # inconv: [D_IN] + MLP_IN
    weights['w0'], vecs['c0'] = fold_linear_bn(D_IN, MLP_IN[0])
    weights['w1'], vecs['c1'] = fold_linear_bn(MLP_IN[0], MLP_IN[1])
    weights['w2'], vecs['c2'] = fold_linear_bn(MLP_IN[1], MLP_IN[2])
    # in_norm (GroupNorm) affine
    vecs['gin'] = uni((D_MODEL,), 0.5, 1.5)
    vecs['bin'] = nrm((D_MODEL,), std=0.05)
    # fc1_k: Linear(d_model, n_head*d_k) and master query Q (n_head, d_k), folded together:
    #   score_h = (Q_h @ Wk_h) / temp . v + (Q_h . bk_h) / temp   (exact in eval mode)
    wk = nrm((N_HEAD * D_K, D_MODEL), std=float(np.sqrt(2.0 / D_K)))
    bk = nrm((N_HEAD * D_K,), std=0.05)
    q = nrm((N_HEAD, D_K), std=float(np.sqrt(2.0 / D_K)))
    qwk = np.zeros((N_HEAD, D_MODEL), np.float32)
    qb = np.zeros((N_HEAD,), np.float32)
    for h in range(N_HEAD):
        qwk[h] = (q[h] @ wk[h * D_K:(h + 1) * D_K, :]) / TEMPERATURE
        qb[h] = float(q[h] @ bk[h * D_K:(h + 1) * D_K]) / TEMPERATURE
    weights['qwk'] = qwk
    vecs['qb'] = qb
    # output MLP: [D_MODEL] + MLP
    weights['wm0'], vecs['cm0'] = fold_linear_bn(D_MODEL, MLP[0])
    weights['wm1'], vecs['cm1'] = fold_linear_bn(MLP[0], MLP[1])
    # out_norm (GroupNorm) affine
    vecs['gout'] = uni((C_OUT,), 0.5, 1.5)
    vecs['bout'] = nrm((C_OUT,), std=0.05)
    # constant per-head pooling / expansion matrices (head reductions & broadcasts on the MXU)
    pool = np.zeros((N_HEAD, D_MODEL), np.float32)
    for h in range(N_HEAD):
        pool[h, h * D_G:(h + 1) * D_G] = 1.0
    weights['pool'] = pool
    weights['expand'] = np.ascontiguousarray(pool.T)
    pool_o = np.zeros((N_HEAD, C_OUT), np.float32)
    for h in range(N_HEAD):
        pool_o[h, h * G_OUT:(h + 1) * G_OUT] = 1.0
    weights['pool_o'] = pool_o
    weights['expand_o'] = np.ascontiguousarray(pool_o.T)

    # pack everything into the two VMEM slabs
    wslab = np.zeros((W_ROWS, W_COLS), np.float32)
    for name, (r, e, d) in W_OFF.items():
        wslab[r:r + e, 0:d] = weights[name]
    vslab = np.zeros((V_ROWS, 1), np.float32)
    for name, (r, l) in V_OFF.items():
        vslab[r:r + l, 0] = vecs[name]
    return {'wslab': jnp.asarray(wslab), 'vslab': jnp.asarray(vslab)}


if __name__ == "__main__":
    key = jax.random.PRNGKey(0)
    k_x, k_bp, k_p = jax.random.split(key, 3)

    B, T, H, W = 2, 8, 16, 16      # small shapes: 2 images of 16x16, 4 channels, seq len 8
    x = jax.random.normal(k_x, (B, T, IN_CHANNELS, H, W), dtype=jnp.float32)
    batch_positions = jax.random.uniform(k_bp, (B, T), dtype=jnp.float32,
                                         minval=0.0, maxval=365.0)
    params = make_params(k_p)

    out = ltae2d_pastis_forward(x, batch_positions, params)
    out = jax.block_until_ready(out)

    num_patches = (H // PATCH_SIZE) * (W // PATCH_SIZE)
    assert out.shape == (B, num_patches, C_OUT), out.shape
    assert bool(jnp.all(jnp.isfinite(out)))
    print("KERNEL_OK")
</pallas_src>

<mosaic_0001>
module attributes {stable_mosaic.version = 11 : i64} {
  func.func @ltae2d_pastis_kernel(%arg0: i32, %arg1: memref<8x64x128xbf16, #tpu.memory_space<vmem>>, %arg2: memref<8x32x8xf32, #tpu.memory_space<vmem>>, %arg3: memref<8x128xf32, #tpu.memory_space<vmem>>, %arg4: memref<224x64xf32, #tpu.memory_space<vmem>>, %arg5: memref<272x1xf32, #tpu.memory_space<vmem>>, %arg6: memref<32x128xf32, #tpu.memory_space<vmem>>, %arg7: memref<8x32x128xf32, #tpu.memory_space<vmem>>, %arg8: memref<8x32x128xf32, #tpu.memory_space<vmem>>) attributes {dimension_semantics = [#tpu.dimension_semantics<parallel>], iteration_bounds = array<i64: 1>, scalar_prefetch = 0 : i64, scratch_operands = 2 : i64, tpu.core_type = #tpu.core_type<tc>, window_params = [{transform_indices = @transform_0, window_bounds = array<i64: 8, 64, 128>}, {pipeline_mode = #tpu.pipeline_mode<synchronous>, transform_indices = @transform_1, window_bounds = array<i64: 8, 32, 8>}, {transform_indices = @transform_2, window_bounds = array<i64: 8, 128>}, {pipeline_mode = #tpu.pipeline_mode<synchronous>, transform_indices = @transform_3, window_bounds = array<i64: 224, 64>}, {pipeline_mode = #tpu.pipeline_mode<synchronous>, transform_indices = @transform_4, window_bounds = array<i64: 272, 1>}, {transform_indices = @transform_5, window_bounds = array<i64: 32, 128>}]} {
    %c0 = arith.constant 0 : index
    %c0_0 = arith.constant 0 : index
    %0 = vector.load %arg4[%c0, %c0_0] : memref<224x64xf32, #tpu.memory_space<vmem>>, vector<8x64xf32>
    %c0_1 = arith.constant 0 : index
    %c0_2 = arith.constant 0 : index
    %1 = vector.load %arg5[%c0_1, %c0_2] : memref<272x1xf32, #tpu.memory_space<vmem>>, vector<8x1xf32>
    %c8 = arith.constant 8 : index
    %c0_3 = arith.constant 0 : index
    %2 = vector.load %arg4[%c8, %c0_3] : memref<224x64xf32, #tpu.memory_space<vmem>>, vector<16x8xf32>
    %c8_4 = arith.constant 8 : index
    %c0_5 = arith.constant 0 : index
    %3 = vector.load %arg5[%c8_4, %c0_5] : memref<272x1xf32, #tpu.memory_space<vmem>>, vector<16x1xf32>
    %c24 = arith.constant 24 : index
    %c0_6 = arith.constant 0 : index
    %4 = vector.load %arg4[%c24, %c0_6] : memref<224x64xf32, #tpu.memory_space<vmem>>, vector<32x16xf32>
    %c24_7 = arith.constant 24 : index
    %c0_8 = arith.constant 0 : index
    %5 = vector.load %arg5[%c24_7, %c0_8] : memref<272x1xf32, #tpu.memory_space<vmem>>, vector<32x1xf32>
    %c56 = arith.constant 56 : index
    %c0_9 = arith.constant 0 : index
    %6 = vector.load %arg5[%c56, %c0_9] : memref<272x1xf32, #tpu.memory_space<vmem>>, vector<32x1xf32>
    %c88 = arith.constant 88 : index
    %c0_10 = arith.constant 0 : index
    %7 = vector.load %arg5[%c88, %c0_10] : memref<272x1xf32, #tpu.memory_space<vmem>>, vector<32x1xf32>
    %c56_11 = arith.constant 56 : index
    %c0_12 = arith.constant 0 : index
    %8 = vector.load %arg4[%c56_11, %c0_12] : memref<224x64xf32, #tpu.memory_space<vmem>>, vector<4x32xf32>
    %c120 = arith.constant 120 : index
    %c0_13 = arith.constant 0 : index
    %9 = vector.load %arg5[%c120, %c0_13] : memref<272x1xf32, #tpu.memory_space<vmem>>, vector<4x1xf32>
    %c64 = arith.constant 64 : index
    %c0_14 = arith.constant 0 : index
    %10 = vector.load %arg4[%c64, %c0_14] : memref<224x64xf32, #tpu.memory_space<vmem>>, vector<48x32xf32>
    %c128 = arith.constant 128 : index
    %c0_15 = arith.constant 0 : index
    %11 = vector.load %arg5[%c128, %c0_15] : memref<272x1xf32, #tpu.memory_space<vmem>>, vector<48x1xf32>
    %c112 = arith.constant 112 : index
    %c0_16 = arith.constant 0 : index
    %12 = vector.load %arg4[%c112, %c0_16] : memref<224x64xf32, #tpu.memory_space<vmem>>, vector<32x48xf32>
    %c176 = arith.constant 176 : index
    %c0_17 = arith.constant 0 : index
    %13 = vector.load %arg5[%c176, %c0_17] : memref<272x1xf32, #tpu.memory_space<vmem>>, vector<32x1xf32>
    %c208 = arith.constant 208 : index
    %c0_18 = arith.constant 0 : index
    %14 = vector.load %arg5[%c208, %c0_18] : memref<272x1xf32, #tpu.memory_space<vmem>>, vector<32x1xf32>
    %c240 = arith.constant 240 : index
    %c0_19 = arith.constant 0 : index
    %15 = vector.load %arg5[%c240, %c0_19] : memref<272x1xf32, #tpu.memory_space<vmem>>, vector<32x1xf32>
    %c144 = arith.constant 144 : index
    %c0_20 = arith.constant 0 : index
    %16 = vector.load %arg4[%c144, %c0_20] : memref<224x64xf32, #tpu.memory_space<vmem>>, vector<4x32xf32>
    %c152 = arith.constant 152 : index
    %c0_21 = arith.constant 0 : index
    %17 = vector.load %arg4[%c152, %c0_21] : memref<224x64xf32, #tpu.memory_space<vmem>>, vector<32x4xf32>
    %c184 = arith.constant 184 : index
    %c0_22 = arith.constant 0 : index
    %18 = vector.load %arg4[%c184, %c0_22] : memref<224x64xf32, #tpu.memory_space<vmem>>, vector<4x32xf32>
    %c192 = arith.constant 192 : index
    %c0_23 = arith.constant 0 : index
    %19 = vector.load %arg4[%c192, %c0_23] : memref<224x64xf32, #tpu.memory_space<vmem>>, vector<32x4xf32>
    %cst = arith.constant 0.000000e+00 : f32
    %20 = vector.broadcast %cst : f32 to vector<4x128xf32>
    %c0_i32 = arith.constant 0 : i32
    %c8_i32 = arith.constant 8 : i32
    %21 = arith.addi %c0_i32, %c8_i32 : i32
    %c1_i32 = arith.constant 1 : i32
    %22:2 = scf.for %arg9 = %c0_i32 to %21 step %c1_i32 iter_args(%arg10 = %20, %arg11 = %20) -> (vector<4x128xf32>, vector<4x128xf32>)  : i32 {
      %84 = arith.index_cast %arg9 : i32 to index
      %c0_59 = arith.constant 0 : index
      %c0_60 = arith.constant 0 : index
      %85 = vector.load %arg1[%84, %c0_59, %c0_60] : memref<8x64x128xbf16, #tpu.memory_space<vmem>>, vector<1x64x128xbf16>
      %86 = vector.shape_cast %85 : vector<1x64x128xbf16> to vector<64x128xbf16>
      %87 = arith.extf %86 : vector<64x128xbf16> to vector<64x128xf32>
      %cst_61 = arith.constant dense<0.000000e+00> : vector<8x128xf32>
      %88 = tpu.matmul %0, %87, %cst_61 {dimension_numbers = #tpu.dot_dimension_numbers<[1], [0], [0], [1], [0, 0, 1, 1], [], []>} : vector<8x64xf32>, vector<64x128xf32>, vector<8x128xf32> -> vector<8x128xf32>
      %89 = vector.broadcast %1 : vector<8x1xf32> to vector<8x128xf32>
      %90 = arith.addf %88, %89 : vector<8x128xf32>
      %cst_62 = arith.constant 0.000000e+00 : f32
      %91 = vector.broadcast %cst_62 : f32 to vector<8x128xf32>
      %92 = arith.maximumf %90, %91 : vector<8x128xf32>
      %cst_63 = arith.constant dense<0.000000e+00> : vector<16x128xf32>
      %93 = tpu.matmul %2, %92, %cst_63 {dimension_numbers = #tpu.dot_dimension_numbers<[1], [0], [0], [1], [0, 0, 1, 1], [], []>} : vector<16x8xf32>, vector<8x128xf32>, vector<16x128xf32> -> vector<16x128xf32>
      %94 = vector.broadcast %3 : vector<16x1xf32> to vector<16x128xf32>
      %95 = arith.addf %93, %94 : vector<16x128xf32>
      %cst_64 = arith.constant 0.000000e+00 : f32
      %96 = vector.broadcast %cst_64 : f32 to vector<16x128xf32>
      %97 = arith.maximumf %95, %96 : vector<16x128xf32>
      %cst_65 = arith.constant dense<0.000000e+00> : vector<32x128xf32>
      %98 = tpu.matmul %4, %97, %cst_65 {dimension_numbers = #tpu.dot_dimension_numbers<[1], [0], [0], [1], [0, 0, 1, 1], [], []>} : vector<32x16xf32>, vector<16x128xf32>, vector<32x128xf32> -> vector<32x128xf32>
      %99 = vector.broadcast %5 : vector<32x1xf32> to vector<32x128xf32>
      %100 = arith.addf %98, %99 : vector<32x128xf32>
      %cst_66 = arith.constant 0.000000e+00 : f32
      %101 = vector.broadcast %cst_66 : f32 to vector<32x128xf32>
      %102 = arith.maximumf %100, %101 : vector<32x128xf32>
      %103 = arith.index_cast %arg9 : i32 to index
      %c0_67 = arith.constant 0 : index
      %c0_68 = arith.constant 0 : index
      %104 = vector.load %arg7[%103, %c0_67, %c0_68] : memref<8x32x128xf32, #tpu.memory_space<vmem>>, vector<1x32x128xf32>
      %105 = vector.shape_cast %104 : vector<1x32x128xf32> to vector<32x128xf32>
      %106 = vector.shape_cast %102 : vector<32x128xf32> to vector<1x32x128xf32>
      tpu.vector_store %arg7[%103, %c0_67, %c0_68], %106 {strides = array<i32>} : memref<8x32x128xf32, #tpu.memory_space<vmem>>, vector<1x32x128xf32>,
      %cst_69 = arith.constant dense<0.000000e+00> : vector<4x128xf32>
      %107 = tpu.matmul %16, %102, %cst_69 {dimension_numbers = #tpu.dot_dimension_numbers<[1], [0], [0], [1], [0, 0, 1, 1], [], []>} : vector<4x32xf32>, vector<32x128xf32>, vector<4x128xf32> -> vector<4x128xf32>
      %108 = arith.addf %arg10, %107 : vector<4x128xf32>
      %109 = arith.mulf %102, %102 : vector<32x128xf32>
      %cst_70 = arith.constant dense<0.000000e+00> : vector<4x128xf32>
      %110 = tpu.matmul %16, %109, %cst_70 {dimension_numbers = #tpu.dot_dimension_numbers<[1], [0], [0], [1], [0, 0, 1, 1], [], []>} : vector<4x32xf32>, vector<32x128xf32>, vector<4x128xf32> -> vector<4x128xf32>
      %111 = arith.addf %arg11, %110 : vector<4x128xf32>
      scf.yield %108, %111 : vector<4x128xf32>, vector<4x128xf32>
    }
    %c8_i32_24 = arith.constant 8 : i32
    %cst_25 = arith.constant 1.562500e-02 : f32
    %23 = vector.broadcast %cst_25 : f32 to vector<4x128xf32>
    %24 = arith.mulf %22#0, %23 : vector<4x128xf32>
    %cst_26 = arith.constant 1.562500e-02 : f32
    %25 = vector.broadcast %cst_26 : f32 to vector<4x128xf32>
    %26 = arith.mulf %22#1, %25 : vector<4x128xf32>
    %27 = arith.mulf %24, %24 : vector<4x128xf32>
    %28 = arith.subf %26, %27 : vector<4x128xf32>
    %cst_27 = arith.constant 0.000000e+00 : f32
    %29 = vector.broadcast %cst_27 : f32 to vector<4x128xf32>
    %30 = arith.maximumf %28, %29 : vector<4x128xf32>
    %cst_28 = arith.constant 9.99999974E-6 : f32
    %31 = vector.broadcast %cst_28 : f32 to vector<4x128xf32>
    %32 = arith.addf %30, %31 : vector<4x128xf32>
    %33 = math.rsqrt %32 : vector<4x128xf32>
    %cst_29 = arith.constant dense<0.000000e+00> : vector<32x128xf32>
    %34 = tpu.matmul %17, %33, %cst_29 {dimension_numbers = #tpu.dot_dimension_numbers<[1], [0], [0], [1], [0, 0, 1, 1], [], []>} : vector<32x4xf32>, vector<4x128xf32>, vector<32x128xf32> -> vector<32x128xf32>
    %35 = vector.broadcast %6 : vector<32x1xf32> to vector<32x128xf32>
    %36 = arith.mulf %34, %35 : vector<32x128xf32>
    %cst_30 = arith.constant dense<0.000000e+00> : vector<32x128xf32>
    %37 = tpu.matmul %17, %24, %cst_30 {dimension_numbers = #tpu.dot_dimension_numbers<[1], [0], [0], [1], [0, 0, 1, 1], [], []>} : vector<32x4xf32>, vector<4x128xf32>, vector<32x128xf32> -> vector<32x128xf32>
    %38 = arith.mulf %37, %36 : vector<32x128xf32>
    %39 = vector.broadcast %7 : vector<32x1xf32> to vector<32x128xf32>
    %40 = arith.subf %39, %38 : vector<32x128xf32>
    %c0_31 = arith.constant 0 : index
    %c0_32 = arith.constant 0 : index
    %41 = vector.load %arg3[%c0_31, %c0_32] : memref<8x128xf32, #tpu.memory_space<vmem>>, vector<8x128xf32>
    %c0_i32_33 = arith.constant 0 : i32
    %c8_i32_34 = arith.constant 8 : i32
    %42 = arith.addi %c0_i32_33, %c8_i32_34 : i32
    %c1_i32_35 = arith.constant 1 : i32
    scf.for %arg9 = %c0_i32_33 to %42 step %c1_i32_35  : i32 {
      %c1_i32_59 = arith.constant 1 : i32
      %84 = arith.muli %arg9, %c1_i32_59 : i32
      %c0_i32_60 = arith.constant 0 : i32
      %85 = arith.addi %c0_i32_60, %84 : i32
      %86 = arith.index_cast %85 : i32 to index
      %c0_61 = arith.constant 0 : index
      %c0_62 = arith.constant 0 : index
      %87 = vector.load %arg2[%86, %c0_61, %c0_62] : memref<8x32x8xf32, #tpu.memory_space<vmem>>, vector<1x32x8xf32>
      %88 = vector.shape_cast %87 : vector<1x32x8xf32> to vector<32x8xf32>
      %cst_63 = arith.constant dense<0.000000e+00> : vector<32x128xf32>
      %89 = tpu.matmul %88, %41, %cst_63 {dimension_numbers = #tpu.dot_dimension_numbers<[1], [0], [0], [1], [0, 0, 1, 1], [], []>} : vector<32x8xf32>, vector<8x128xf32>, vector<32x128xf32> -> vector<32x128xf32>
      %90 = arith.addf %89, %40 : vector<32x128xf32>
      %91 = arith.index_cast %85 : i32 to index
      %c0_64 = arith.constant 0 : index
      %c0_65 = arith.constant 0 : index
      %92 = vector.load %arg8[%91, %c0_64, %c0_65] : memref<8x32x128xf32, #tpu.memory_space<vmem>>, vector<1x32x128xf32>
      %93 = vector.shape_cast %92 : vector<1x32x128xf32> to vector<32x128xf32>
      %94 = vector.shape_cast %90 : vector<32x128xf32> to vector<1x32x128xf32>
      tpu.vector_store %arg8[%91, %c0_64, %c0_65], %94 {strides = array<i32>} : memref<8x32x128xf32, #tpu.memory_space<vmem>>, vector<1x32x128xf32>,
    }
    %c8_i32_36 = arith.constant 8 : i32
    %cst_37 = arith.constant 0xFF800000 : f32
    %43 = vector.broadcast %cst_37 : f32 to vector<4x128xf32>
    %cst_38 = arith.constant 0.000000e+00 : f32
    %44 = vector.broadcast %cst_38 : f32 to vector<4x128xf32>
    %cst_39 = arith.constant 0.000000e+00 : f32
    %45 = vector.broadcast %cst_39 : f32 to vector<32x128xf32>
    %c0_i32_40 = arith.constant 0 : i32
    %c8_i32_41 = arith.constant 8 : i32
    %46 = arith.addi %c0_i32_40, %c8_i32_41 : i32
    %c1_i32_42 = arith.constant 1 : i32
    %47:3 = scf.for %arg9 = %c0_i32_40 to %46 step %c1_i32_42 iter_args(%arg10 = %43, %arg11 = %44, %arg12 = %45) -> (vector<4x128xf32>, vector<4x128xf32>, vector<32x128xf32>)  : i32 {
      %84 = arith.index_cast %arg9 : i32 to index
      %c0_59 = arith.constant 0 : index
      %c0_60 = arith.constant 0 : index
      %85 = vector.load %arg7[%84, %c0_59, %c0_60] : memref<8x32x128xf32, #tpu.memory_space<vmem>>, vector<1x32x128xf32>
      %86 = vector.shape_cast %85 : vector<1x32x128xf32> to vector<32x128xf32>
      %87 = arith.mulf %86, %36 : vector<32x128xf32>
      %88 = arith.index_cast %arg9 : i32 to index
      %c0_61 = arith.constant 0 : index
      %c0_62 = arith.constant 0 : index
      %89 = vector.load %arg8[%88, %c0_61, %c0_62] : memref<8x32x128xf32, #tpu.memory_space<vmem>>, vector<1x32x128xf32>
      %90 = vector.shape_cast %89 : vector<1x32x128xf32> to vector<32x128xf32>
      %91 = arith.addf %87, %90 : vector<32x128xf32>
      %cst_63 = arith.constant dense<0.000000e+00> : vector<4x128xf32>
      %92 = tpu.matmul %8, %91, %cst_63 {dimension_numbers = #tpu.dot_dimension_numbers<[1], [0], [0], [1], [0, 0, 1, 1], [], []>} : vector<4x32xf32>, vector<32x128xf32>, vector<4x128xf32> -> vector<4x128xf32>
      %93 = vector.broadcast %9 : vector<4x1xf32> to vector<4x128xf32>
      %94 = arith.addf %92, %93 : vector<4x128xf32>
      %95 = arith.maximumf %arg10, %94 : vector<4x128xf32>
      %96 = arith.subf %arg10, %95 : vector<4x128xf32>
      %97 = math.exp %96 : vector<4x128xf32>
      %98 = arith.subf %94, %95 : vector<4x128xf32>
      %99 = math.exp %98 : vector<4x128xf32>
      %100 = arith.mulf %97, %arg11 : vector<4x128xf32>
      %101 = arith.addf %100, %99 : vector<4x128xf32>
      %cst_64 = arith.constant dense<0.000000e+00> : vector<32x128xf32>
      %102 = tpu.matmul %17, %97, %cst_64 {dimension_numbers = #tpu.dot_dimension_numbers<[1], [0], [0], [1], [0, 0, 1, 1], [], []>} : vector<32x4xf32>, vector<4x128xf32>, vector<32x128xf32> -> vector<32x128xf32>
      %cst_65 = arith.constant dense<0.000000e+00> : vector<32x128xf32>
      %103 = tpu.matmul %17, %99, %cst_65 {dimension_numbers = #tpu.dot_dimension_numbers<[1], [0], [0], [1], [0, 0, 1, 1], [], []>} : vector<32x4xf32>, vector<4x128xf32>, vector<32x128xf32> -> vector<32x128xf32>
      %104 = arith.mulf %102, %arg12 : vector<32x128xf32>
      %105 = arith.mulf %103, %91 : vector<32x128xf32>
      %106 = arith.addf %104, %105 : vector<32x128xf32>
      scf.yield %95, %101, %106 : vector<4x128xf32>, vector<4x128xf32>, vector<32x128xf32>
    }
    %c8_i32_43 = arith.constant 8 : i32
    %48 = tpu.reciprocal %47#1 {approx = true} : vector<4x128xf32> -> vector<4x128xf32>
    %49 = arith.mulf %47#1, %48 : vector<4x128xf32>
    %cst_44 = arith.constant 2.000000e+00 : f32
    %50 = vector.broadcast %cst_44 : f32 to vector<4x128xf32>
    %51 = arith.subf %50, %49 : vector<4x128xf32>
    %52 = arith.mulf %48, %51 : vector<4x128xf32>
    %cst_45 = arith.constant dense<0.000000e+00> : vector<32x128xf32>
    %53 = tpu.matmul %17, %52, %cst_45 {dimension_numbers = #tpu.dot_dimension_numbers<[1], [0], [0], [1], [0, 0, 1, 1], [], []>} : vector<32x4xf32>, vector<4x128xf32>, vector<32x128xf32> -> vector<32x128xf32>
    %54 = arith.mulf %47#2, %53 : vector<32x128xf32>
    %cst_46 = arith.constant dense<0.000000e+00> : vector<48x128xf32>
    %55 = tpu.matmul %10, %54, %cst_46 {dimension_numbers = #tpu.dot_dimension_numbers<[1], [0], [0], [1], [0, 0, 1, 1], [], []>} : vector<48x32xf32>, vector<32x128xf32>, vector<48x128xf32> -> vector<48x128xf32>
    %56 = vector.broadcast %11 : vector<48x1xf32> to vector<48x128xf32>
    %57 = arith.addf %55, %56 : vector<48x128xf32>
    %cst_47 = arith.constant 0.000000e+00 : f32
    %58 = vector.broadcast %cst_47 : f32 to vector<48x128xf32>
    %59 = arith.maximumf %57, %58 : vector<48x128xf32>
    %cst_48 = arith.constant dense<0.000000e+00> : vector<32x128xf32>
    %60 = tpu.matmul %12, %59, %cst_48 {dimension_numbers = #tpu.dot_dimension_numbers<[1], [0], [0], [1], [0, 0, 1, 1], [], []>} : vector<32x48xf32>, vector<48x128xf32>, vector<32x128xf32> -> vector<32x128xf32>
    %61 = vector.broadcast %13 : vector<32x1xf32> to vector<32x128xf32>
    %62 = arith.addf %60, %61 : vector<32x128xf32>
    %cst_49 = arith.constant 0.000000e+00 : f32
    %63 = vector.broadcast %cst_49 : f32 to vector<32x128xf32>
    %64 = arith.maximumf %62, %63 : vector<32x128xf32>
    %cst_50 = arith.constant dense<0.000000e+00> : vector<4x128xf32>
    %65 = tpu.matmul %18, %64, %cst_50 {dimension_numbers = #tpu.dot_dimension_numbers<[1], [0], [0], [1], [0, 0, 1, 1], [], []>} : vector<4x32xf32>, vector<32x128xf32>, vector<4x128xf32> -> vector<4x128xf32>
    %cst_51 = arith.constant 1.250000e-01 : f32
    %66 = vector.broadcast %cst_51 : f32 to vector<4x128xf32>
    %67 = arith.mulf %65, %66 : vector<4x128xf32>
    %cst_52 = arith.constant dense<0.000000e+00> : vector<32x128xf32>
    %68 = tpu.matmul %19, %67, %cst_52 {dimension_numbers = #tpu.dot_dimension_numbers<[1], [0], [0], [1], [0, 0, 1, 1], [], []>} : vector<32x4xf32>, vector<4x128xf32>, vector<32x128xf32> -> vector<32x128xf32>
    %69 = arith.subf %64, %68 : vector<32x128xf32>
    %70 = arith.mulf %69, %69 : vector<32x128xf32>
    %cst_53 = arith.constant dense<0.000000e+00> : vector<4x128xf32>
    %71 = tpu.matmul %18, %70, %cst_53 {dimension_numbers = #tpu.dot_dimension_numbers<[1], [0], [0], [1], [0, 0, 1, 1], [], []>} : vector<4x32xf32>, vector<32x128xf32>, vector<4x128xf32> -> vector<4x128xf32>
    %cst_54 = arith.constant 1.250000e-01 : f32
    %72 = vector.broadcast %cst_54 : f32 to vector<4x128xf32>
    %73 = arith.mulf %71, %72 : vector<4x128xf32>
    %cst_55 = arith.constant 9.99999974E-6 : f32
    %74 = vector.broadcast %cst_55 : f32 to vector<4x128xf32>
    %75 = arith.addf %73, %74 : vector<4x128xf32>
    %76 = math.rsqrt %75 : vector<4x128xf32>
    %cst_56 = arith.constant dense<0.000000e+00> : vector<32x128xf32>
    %77 = tpu.matmul %19, %76, %cst_56 {dimension_numbers = #tpu.dot_dimension_numbers<[1], [0], [0], [1], [0, 0, 1, 1], [], []>} : vector<32x4xf32>, vector<4x128xf32>, vector<32x128xf32> -> vector<32x128xf32>
    %78 = arith.mulf %69, %77 : vector<32x128xf32>
    %79 = vector.broadcast %14 : vector<32x1xf32> to vector<32x128xf32>
    %80 = arith.mulf %78, %79 : vector<32x128xf32>
    %81 = vector.broadcast %15 : vector<32x1xf32> to vector<32x128xf32>
    %82 = arith.addf %80, %81 : vector<32x128xf32>
    %c0_57 = arith.constant 0 : index
    %c0_58 = arith.constant 0 : index
    %83 = vector.load %arg6[%c0_57, %c0_58] : memref<32x128xf32, #tpu.memory_space<vmem>>, vector<32x128xf32>
    tpu.vector_store %arg6[%c0_57, %c0_58], %82 {strides = array<i32>} : memref<32x128xf32, #tpu.memory_space<vmem>>, vector<32x128xf32>,
    return
  }
  func.func @transform_0(%arg0: i32) -> (i32, i32, i32) {
    %c0_i32 = arith.constant 0 : i32
    %c0_i32_0 = arith.constant 0 : i32
    %c0_i32_1 = arith.constant 0 : i32
    return %c0_i32, %c0_i32_0, %arg0 : i32, i32, i32
  }
  func.func @transform_1(%arg0: i32) -> (i32, i32, i32) {
    %c0_i32 = arith.constant 0 : i32
    %c0_i32_0 = arith.constant 0 : i32
    %c0_i32_1 = arith.constant 0 : i32
    %c0_i32_2 = arith.constant 0 : i32
    return %c0_i32, %c0_i32_0, %c0_i32_1 : i32, i32, i32
  }
  func.func @transform_2(%arg0: i32) -> (i32, i32) {
    %c0_i32 = arith.constant 0 : i32
    %c0_i32_0 = arith.constant 0 : i32
    return %c0_i32, %arg0 : i32, i32
  }
  func.func @transform_3(%arg0: i32) -> (i32, i32) {
    %c0_i32 = arith.constant 0 : i32
    %c0_i32_0 = arith.constant 0 : i32
    %c0_i32_1 = arith.constant 0 : i32
    return %c0_i32, %c0_i32_0 : i32, i32
  }
  func.func @transform_4(%arg0: i32) -> (i32, i32) {
    %c0_i32 = arith.constant 0 : i32
    %c0_i32_0 = arith.constant 0 : i32
    %c0_i32_1 = arith.constant 0 : i32
    return %c0_i32, %c0_i32_0 : i32, i32
  }
  func.func @transform_5(%arg0: i32) -> (i32, i32) {
    %c0_i32 = arith.constant 0 : i32
    %c0_i32_0 = arith.constant 0 : i32
    return %c0_i32, %arg0 : i32, i32
  }
}

</mosaic_0001>

<llo_original>
// kernel: tpu_custom_call.1
$region0: #{tpu_custom_call.1}
  #allocation0 [shape = 'u32[]', space=smem, size = 0x4, offset = 0x4, fixed_abs, tag = 'smem constant byte address 0x4 - core index']
  #allocation1 [shape = 'u32[144,128]{1,0:T(1,128)}', space=vmem, size = 0x12000, scoped, tag = 'internal scratch']
  #allocation2 [shape = 'f32[8,32,128]{2,1,0:T(8,128)}', space=vmem, size = 0x20000, scoped, tag = 'scratch operand']
  #allocation3 [shape = 'f32[8,32,128]{2,1,0:T(8,128)}', space=vmem, size = 0x20000, scoped, tag = 'scratch operand']
  %s0 = inlined_call_operand.vmem [shape: bf16[8,64,128], index: 0, kind: input, shape index: {}]
  %s1 = inlined_call_operand.vmem [shape: f32[8,32,8], index: 1, kind: input, shape index: {}]
  %s2 = inlined_call_operand.vmem [shape: f32[8,128], index: 2, kind: input, shape index: {}]
  %s3 = inlined_call_operand.vmem [shape: f32[224,64], index: 3, kind: input, shape index: {}]
  %s4 = inlined_call_operand.vmem [shape: f32[272,1], index: 4, kind: input, shape index: {}]
  %s5 = inlined_call_operand.hbm [shape: f32[32,128], index: 5, kind: output, shape index: {}]
  %s6 = sld [smem:[#allocation0]]
  $region51: #{tpu_custom_call.1} parent=0
    _
  %s8 = ssub.s32 1, %s6
  %s9 = scalar_select 0, %s8, %s6
  $region1: #{tpu_custom_call.1} parent=0
    #allocation4 [shape = 'u8[16384]{0}', space=vmem, size = 0x4000, scoped, tag = 'output window, operand 0, single buffered']
    #allocation5 [shape = 's32[1]{0}', space=sflag, size = 0x4, scoped, tag = 'scoped memory for tpu_custom_call.1']
    %10 = vsyncpa [#allocation5], 0
    // Predicated region
    $region2: #{tpu_custom_call.1} parent=1 // pred_check
      _
    $region3: #{tpu_custom_call.1} parent=1 // pred_check_branch
      %12 = sbr.rel (0) target = $region5
    $region4: #{tpu_custom_call.1} parent=1 // pred_region
      _
    $region5: #{tpu_custom_call.1} parent=1 // pred_fallthru
      _
    // Predicated region
    $region6: #{tpu_custom_call.1} parent=1 // pred_check
      _
    $region7: #{tpu_custom_call.1} parent=1 // pred_check_branch
      %14 = sbr.rel (0) target = $region9
    $region8: #{tpu_custom_call.1} parent=1 // pred_region
      _
    $region9: #{tpu_custom_call.1} parent=1 // pred_fallthru
      _
    // Predicated region
    $region10: #{tpu_custom_call.1} parent=1 // pred_check
      _
    $region11: #{tpu_custom_call.1} parent=1 // pred_check_branch
      %16 = sbr.rel (0) target = $region13
    $region12: #{tpu_custom_call.1} parent=1 // pred_region
      _
    $region13: #{tpu_custom_call.1} parent=1 // pred_fallthru
      _
    // Predicated region
    $region14: #{tpu_custom_call.1} parent=1 // pred_check
      _
    $region15: #{tpu_custom_call.1} parent=1 // pred_check_branch
      %18 = sbr.rel (0) target = $region17
    $region16: #{tpu_custom_call.1} parent=1 // pred_region
      _
    $region17: #{tpu_custom_call.1} parent=1 // pred_fallthru
      _
    // Predicated region
    $region18: #{tpu_custom_call.1} parent=1 // pred_check
      _
    $region19: #{tpu_custom_call.1} parent=1 // pred_check_branch
      %20 = sbr.rel (0) target = $region21
    $region20: #{tpu_custom_call.1} parent=1 // pred_region
      _
    $region21: #{tpu_custom_call.1} parent=1 // pred_fallthru
      _
    %v21 = vld [vmem:[%s3] sm:$0xff]
    %v22 = vld [vmem:[%s4] sm:$0xff]
    %v23 = vld [vmem:[%s3 + $0x8] sm:$0xff]
    %v24 = vld [vmem:[%s3 + $0x10] sm:$0xff]
    %v25 = vld [vmem:[%s4 + $0x8] sm:$0xff]
    %v26 = vld [vmem:[%s4 + $0x10] sm:$0xff]
    %v27 = vld [vmem:[%s3 + $0x18] sm:$0xff]
    %v28 = vld [vmem:[%s3 + $0x20] sm:$0xff]
    %v29 = vld [vmem:[%s3 + $0x28] sm:$0xff]
    %v30 = vld [vmem:[%s3 + $0x30] sm:$0xff]
    %v31 = vld [vmem:[%s4 + $0x18] sm:$0xff]
    %v32 = vld [vmem:[%s4 + $0x20] sm:$0xff]
    %v33 = vld [vmem:[%s4 + $0x28] sm:$0xff]
    %v34 = vld [vmem:[%s4 + $0x30] sm:$0xff]
    %v35 = vld [vmem:[%s4 + $0x38] sm:$0xff]
    %v36 = vld [vmem:[%s4 + $0x40] sm:$0xff]
    %v37 = vld [vmem:[%s4 + $0x48] sm:$0xff]
    %v38 = vld [vmem:[%s4 + $0x50] sm:$0xff]
    %v39 = vld [vmem:[%s4 + $0x58] sm:$0xff]
    %v40 = vld [vmem:[%s4 + $0x60] sm:$0xff]
    %v41 = vld [vmem:[%s4 + $0x68] sm:$0xff]
    %v42 = vld [vmem:[%s4 + $0x70] sm:$0xff]
    %v43 = vld [vmem:[%s3 + $0x38] sm:$0xf]
    %v44 = vld [vmem:[%s4 + $0x78] sm:$0xf]
    %v45 = vld [vmem:[%s3 + $0x40] sm:$0xff]
    %v46 = vld [vmem:[%s3 + $0x48] sm:$0xff]
    %v47 = vld [vmem:[%s3 + $0x50] sm:$0xff]
    %v48 = vld [vmem:[%s3 + $0x58] sm:$0xff]
    %v49 = vld [vmem:[%s3 + $0x60] sm:$0xff]
    %v50 = vld [vmem:[%s3 + $0x68] sm:$0xff]
    %v51 = vld [vmem:[%s4 + $0x80] sm:$0xff]
    %v52 = vld [vmem:[%s4 + $0x88] sm:$0xff]
    %v53 = vld [vmem:[%s4 + $0x90] sm:$0xff]
    %v54 = vld [vmem:[%s4 + $0x98] sm:$0xff]
    %v55 = vld [vmem:[%s4 + $0xa0] sm:$0xff]
    %v56 = vld [vmem:[%s4 + $0xa8] sm:$0xff]
    %v57 = vld [vmem:[%s3 + $0x70] sm:$0xff]
    %v58 = vld [vmem:[%s3 + $0x78] sm:$0xff]
    %v59 = vld [vmem:[%s3 + $0x80] sm:$0xff]
    %v60 = vld [vmem:[%s3 + $0x88] sm:$0xff]
    %v61 = vld [vmem:[%s4 + $0xb0] sm:$0xff]
    %v62 = vld [vmem:[%s4 + $0xb8] sm:$0xff]
    %v63 = vld [vmem:[%s4 + $0xc0] sm:$0xff]
    %v64 = vld [vmem:[%s4 + $0xc8] sm:$0xff]
    %v65 = vld [vmem:[%s4 + $0xd0] sm:$0xff]
    %v66 = vld [vmem:[%s4 + $0xd8] sm:$0xff]
    %v67 = vld [vmem:[%s4 + $0xe0] sm:$0xff]
    %v68 = vld [vmem:[%s4 + $0xe8] sm:$0xff]
    %v69 = vld [vmem:[%s4 + $0xf0] sm:$0xff]
    %v70 = vld [vmem:[%s4 + $0xf8] sm:$0xff]
    %v71 = vld [vmem:[%s4 + $0x100] sm:$0xff]
    %v72 = vld [vmem:[%s4 + $0x108] sm:$0xff]
    %v73 = vld [vmem:[%s3 + $0x90] sm:$0xf]
    %v74 = vld [vmem:[%s3 + $0x98] sm:$0xff]
    %v75 = vld [vmem:[%s3 + $0xa0] sm:$0xff]
    %v76 = vld [vmem:[%s3 + $0xa8] sm:$0xff]
    %v77 = vld [vmem:[%s3 + $0xb0] sm:$0xff]
    %v78 = vld [vmem:[%s3 + $0xb8] sm:$0xf]
    %v79 = vld [vmem:[%s3 + $0xc0] sm:$0xff]
    %v80 = vld [vmem:[%s3 + $0xc8] sm:$0xff]
    %v81 = vld [vmem:[%s3 + $0xd0] sm:$0xff]
    %v82 = vld [vmem:[%s3 + $0xd8] sm:$0xff]
    loop: start=0, step=1, limit=8
    $region22: #{tpu_custom_call.1} parent=1 // loop_pre_header
      _
    $region23: #{tpu_custom_call.1} parent=1 // loop_header
      %s84 = sphi 0, %s88
      %p85 = scmp.ge.s32.totalorder %s84, 8
      %v89 = vphi 0.0, %v486
      %v90 = vphi 0.0, %v561
    $region24: #{tpu_custom_call.1} parent=1 // loop_header_branch
      %87 = sbr.rel (%p85) target = $region28
    $region25: #{tpu_custom_call.1} parent=1 // loop_body
      %s91 = smul.u32 %s84, 8
      %s92 = smul.addr %s91, 4
      %s93 = scalar_lea.vmem %s0, %s92
      %v94 = vld [vmem:[%s93] sm:$0xf]
      %v95 = vld [vmem:[%s93 + $0x4] sm:$0xf]
      %v96 = vld [vmem:[%s93 + $0x8] sm:$0xf]
      %v97 = vld [vmem:[%s93 + $0xc] sm:$0xf]
      %v98 = vld [vmem:[%s93 + $0x10] sm:$0xf]
      %v99 = vld [vmem:[%s93 + $0x14] sm:$0xf]
      %v100 = vld [vmem:[%s93 + $0x18] sm:$0xf]
      %v101 = vld [vmem:[%s93 + $0x1c] sm:$0xf]
      %v102 = vunpack.c.l.bf16 %v94
      %v103 = vunpack.c.l.bf16 %v95
      %v104 = vunpack.c.l.bf16 %v96
      %v105 = vunpack.c.l.bf16 %v97
      %v106 = vunpack.c.l.bf16 %v98
      %v107 = vunpack.c.l.bf16 %v99
      %v108 = vunpack.c.l.bf16 %v100
      %v109 = vunpack.c.l.bf16 %v101
      %111 = vset.pattern.permute.xlu0 0
      %112 = vperm.xlu0 %111, %v22
      %v113 = vpop.permute.xlu0 %112
      %vm115 = vcmask 523264
      %v117 = vsel %vm115, %v21, 0
      %119 = vmatprep.subr.mxu0 0.0
      %120 = vmatpush1.msra.mxu0 %v102
      %121 = vmatprep.subr.mxu0 0.0
      %122 = vmatpush1.msra.mxu0 %v103
      %123 = vmatprep.subr.mxu0 0.0
      %124 = vmatpush1.msra.mxu0 %v104
      %125 = vmatprep.subr.mxu0 0.0
      %126 = vmatpush1.msra.mxu0 %v105
      %127 = vmatprep.subr.mxu0 0.0
      %128 = vmatpush1.msra.mxu0 %v106
      %129 = vmatprep.subr.mxu0 0.0
      %130 = vmatpush1.msra.mxu0 %v107
      %131 = vmatprep.subr.mxu0 0.0
      %132 = vmatpush1.msra.mxu0 %v108
      %133 = vmatprep.subr.mxu0 0.0
      %134 = vmatpush1.msra.mxu0 %v109
      %135 = vmatprep.subr.mxu0 0.0
      %136 = vmatpush1.msra.mxu0 0.0
      %137 = vmatprep.subr.mxu0 0.0
      %138 = vmatpush1.msra.mxu0 0.0
      %139 = vmatprep.subr.mxu0 0.0
      %140 = vmatpush1.msra.mxu0 0.0
      %141 = vmatprep.subr.mxu0 0.0
      %142 = vmatpush1.msra.mxu0 0.0
      %143 = vmatprep.subr.mxu0 0.0
      %144 = vmatpush1.msra.mxu0 0.0
      %145 = vmatprep.subr.mxu0 0.0
      %146 = vmatpush1.msra.mxu0 0.0
      %147 = vmatprep.subr.mxu0 0.0
      %148 = vmatpush1.msra.mxu0 0.0
      %149 = vmatprep.subr.mxu0 0.0
      %150 = vmatpush1.msra.mxu0 0.0
      %151 = vmatprep.subr.mxu0 0.0
      %152 = vmatpush1.msra.mxu0 0.0
      %153 = vmatprep.subr.mxu0 0.0
      %154 = vmatpush1.msra.mxu0 0.0
      %155 = vmatprep.subr.mxu0 0.0
      %156 = vmatpush1.msra.mxu0 0.0
      %157 = vmatprep.subr.mxu0 0.0
      %158 = vmatpush1.msra.mxu0 0.0
      %159 = vmatprep.subr.mxu0 0.0
      %160 = vmatpush1.msra.mxu0 0.0
      %161 = vmatprep.subr.mxu0 0.0
      %162 = vmatpush1.msra.mxu0 0.0
      %163 = vmatprep.subr.mxu0 0.0
      %164 = vmatpush1.msra.mxu0 0.0
      %165 = vmatprep.subr.mxu0 0.0
      %166 = vmatpush1.msra.mxu0 0.0
      %167 = vmatprep.subr.mxu0 0.0
      %168 = vmatpush1.msra.mxu0 0.0
      %169 = vmatprep.subr.mxu0 0.0
      %170 = vmatpush1.msra.mxu0 0.0
      %171 = vmatprep.subr.mxu0 0.0
      %172 = vmatpush1.msra.mxu0 0.0
      %173 = vmatprep.subr.mxu0 0.0
      %174 = vmatpush1.msra.mxu0 0.0
      %175 = vmatprep.subr.mxu0 0.0
      %176 = vmatpush1.msra.mxu0 0.0
      %177 = vmatprep.subr.mxu0 0.0
      %178 = vmatpush1.msra.mxu0 0.0
      %179 = vmatprep.subr.mxu0 0.0
      %180 = vmatpush1.msra.mxu0 0.0
      %181 = vmatprep.subr.mxu0 0.0
      %182 = vmatpush1.msra.mxu0 0.0
      %183 = vmatprep.mubr.f32.mxu0 0.0
      %184 = vmatmul.mubr.f32.gmra.mrb[0].mxu0 %v117
      %v185 = vpop.f32.mrb[0].mxu0
      %v186 = vadd.f32 %v113, %v185
      %v187 = vpop.f32.mrb[0].mxu0
      %188 = vdwg.mxu0
      %v189 = vmax.f32 %v186, 0.0
      %191 = vset.pattern.permute.xlu0 0
      %192 = vperm.xlu0 %191, %v25
      %v193 = vpop.permute.xlu0 %192
      %196 = vset.pattern.permute.xlu0 0
      %197 = vperm.xlu0 %196, %v26
      %v198 = vpop.permute.xlu0 %197
      %vm200 = vcmask 64512
      %v202 = vsel %vm200, %v23, 0
      %v205 = vsel %vm200, %v24, 0
      %207 = vmatprep.subr.mxu0 0.0
      %208 = vmatpush1.msra.mxu0 %v189
      %209 = vmatprep.subr.mxu0 0.0
      %210 = vmatpush1.msra.mxu0 0.0
      %211 = vmatprep.subr.mxu0 0.0
      %212 = vmatpush1.msra.mxu0 0.0
      %213 = vmatprep.subr.mxu0 0.0
      %214 = vmatpush1.msra.mxu0 0.0
      %215 = vmatprep.subr.mxu0 0.0
      %216 = vmatpush1.msra.mxu0 0.0
      %217 = vmatprep.subr.mxu0 0.0
      %218 = vmatpush1.msra.mxu0 0.0
      %219 = vmatprep.subr.mxu0 0.0
      %220 = vmatpush1.msra.mxu0 0.0
      %221 = vmatprep.subr.mxu0 0.0
      %222 = vmatpush1.msra.mxu0 0.0
      %223 = vmatprep.subr.mxu0 0.0
      %224 = vmatpush1.msra.mxu0 0.0
      %225 = vmatprep.subr.mxu0 0.0
      %226 = vmatpush1.msra.mxu0 0.0
      %227 = vmatprep.subr.mxu0 0.0
      %228 = vmatpush1.msra.mxu0 0.0
      %229 = vmatprep.subr.mxu0 0.0
      %230 = vmatpush1.msra.mxu0 0.0
      %231 = vmatprep.subr.mxu0 0.0
      %232 = vmatpush1.msra.mxu0 0.0
      %233 = vmatprep.subr.mxu0 0.0
      %234 = vmatpush1.msra.mxu0 0.0
      %235 = vmatprep.subr.mxu0 0.0
      %236 = vmatpush1.msra.mxu0 0.0
      %237 = vmatprep.subr.mxu0 0.0
      %238 = vmatpush1.msra.mxu0 0.0
      %239 = vmatprep.subr.mxu0 0.0
      %240 = vmatpush1.msra.mxu0 0.0
      %241 = vmatprep.subr.mxu0 0.0
      %242 = vmatpush1.msra.mxu0 0.0
      %243 = vmatprep.subr.mxu0 0.0
      %244 = vmatpush1.msra.mxu0 0.0
      %245 = vmatprep.subr.mxu0 0.0
      %246 = vmatpush1.msra.mxu0 0.0
      %247 = vmatprep.subr.mxu0 0.0
      %248 = vmatpush1.msra.mxu0 0.0
      %249 = vmatprep.subr.mxu0 0.0
      %250 = vmatpush1.msra.mxu0 0.0
      %251 = vmatprep.subr.mxu0 0.0
      %252 = vmatpush1.msra.mxu0 0.0
      %253 = vmatprep.subr.mxu0 0.0
      %254 = vmatpush1.msra.mxu0 0.0
      %255 = vmatprep.subr.mxu0 0.0
      %256 = vmatpush1.msra.mxu0 0.0
      %257 = vmatprep.subr.mxu0 0.0
      %258 = vmatpush1.msra.mxu0 0.0
      %259 = vmatprep.subr.mxu0 0.0
      %260 = vmatpush1.msra.mxu0 0.0
      %261 = vmatprep.subr.mxu0 0.0
      %262 = vmatpush1.msra.mxu0 0.0
      %263 = vmatprep.subr.mxu0 0.0
      %264 = vmatpush1.msra.mxu0 0.0
      %265 = vmatprep.subr.mxu0 0.0
      %266 = vmatpush1.msra.mxu0 0.0
      %267 = vmatprep.subr.mxu0 0.0
      %268 = vmatpush1.msra.mxu0 0.0
      %269 = vmatprep.subr.mxu0 0.0
      %270 = vmatpush1.msra.mxu0 0.0
      %271 = vmatprep.mubr.f32.mxu0 0.0
      %272 = vmatmul.mubr.f32.gmra.mrb[0].mxu0 %v202
      %v273 = vpop.f32.mrb[0].mxu0
      %v274 = vadd.f32 %v193, %v273
      %v275 = vpop.f32.mrb[0].mxu0
      %276 = vmatprep.mubr.f32.mxu0 0.0
      %277 = vmatmul.mubr.f32.gmra.mrb[0].mxu0 %v205
      %v278 = vpop.f32.mrb[0].mxu0
      %v279 = vadd.f32 %v198, %v278
      %v280 = vpop.f32.mrb[0].mxu0
      %281 = vdwg.mxu0
      %v282 = vmax.f32 %v274, 0.0
      %v283 = vmax.f32 %v279, 0.0
      %285 = vset.pattern.permute.xlu0 0
      %286 = vperm.xlu0 %285, %v31
      %v287 = vpop.permute.xlu0 %286
      %290 = vset.pattern.permute.xlu0 0
      %291 = vperm.xlu0 %290, %v32
      %v292 = vpop.permute.xlu0 %291
      %295 = vset.pattern.permute.xlu0 0
      %296 = vperm.xlu0 %295, %v33
      %v297 = vpop.permute.xlu0 %296
      %300 = vset.pattern.permute.xlu0 0
      %301 = vperm.xlu0 %300, %v34
      %v302 = vpop.permute.xlu0 %301
      %vm304 = vcmask 130048
      %v306 = vsel %vm304, %v27, 0
      %v309 = vsel %vm304, %v28, 0
      %v312 = vsel %vm304, %v29, 0
      %v315 = vsel %vm304, %v30, 0
      %317 = vmatprep.subr.mxu0 0.0
      %318 = vmatpush1.msra.mxu0 %v282
      %319 = vmatprep.subr.mxu0 0.0
      %320 = vmatpush1.msra.mxu0 %v283
      %321 = vmatprep.subr.mxu0 0.0
      %322 = vmatpush1.msra.mxu0 0.0
      %323 = vmatprep.subr.mxu0 0.0
      %324 = vmatpush1.msra.mxu0 0.0
      %325 = vmatprep.subr.mxu0 0.0
      %326 = vmatpush1.msra.mxu0 0.0
      %327 = vmatprep.subr.mxu0 0.0
      %328 = vmatpush1.msra.mxu0 0.0
      %329 = vmatprep.subr.mxu0 0.0
      %330 = vmatpush1.msra.mxu0 0.0
      %331 = vmatprep.subr.mxu0 0.0
      %332 = vmatpush1.msra.mxu0 0.0
      %333 = vmatprep.subr.mxu0 0.0
      %334 = vmatpush1.msra.mxu0 0.0
      %335 = vmatprep.subr.mxu0 0.0
      %336 = vmatpush1.msra.mxu0 0.0
      %337 = vmatprep.subr.mxu0 0.0
      %338 = vmatpush1.msra.mxu0 0.0
      %339 = vmatprep.subr.mxu0 0.0
      %340 = vmatpush1.msra.mxu0 0.0
      %341 = vmatprep.subr.mxu0 0.0
      %342 = vmatpush1.msra.mxu0 0.0
      %343 = vmatprep.subr.mxu0 0.0
      %344 = vmatpush1.msra.mxu0 0.0
      %345 = vmatprep.subr.mxu0 0.0
      %346 = vmatpush1.msra.mxu0 0.0
      %347 = vmatprep.subr.mxu0 0.0
      %348 = vmatpush1.msra.mxu0 0.0
      %349 = vmatprep.subr.mxu0 0.0
      %350 = vmatpush1.msra.mxu0 0.0
      %351 = vmatprep.subr.mxu0 0.0
      %352 = vmatpush1.msra.mxu0 0.0
      %353 = vmatprep.subr.mxu0 0.0
      %354 = vmatpush1.msra.mxu0 0.0
      %355 = vmatprep.subr.mxu0 0.0
      %356 = vmatpush1.msra.mxu0 0.0
      %357 = vmatprep.subr.mxu0 0.0
      %358 = vmatpush1.msra.mxu0 0.0
      %359 = vmatprep.subr.mxu0 0.0
      %360 = vmatpush1.msra.mxu0 0.0
      %361 = vmatprep.subr.mxu0 0.0
      %362 = vmatpush1.msra.mxu0 0.0
      %363 = vmatprep.subr.mxu0 0.0
      %364 = vmatpush1.msra.mxu0 0.0
      %365 = vmatprep.subr.mxu0 0.0
      %366 = vmatpush1.msra.mxu0 0.0
      %367 = vmatprep.subr.mxu0 0.0
      %368 = vmatpush1.msra.mxu0 0.0
      %369 = vmatprep.subr.mxu0 0.0
      %370 = vmatpush1.msra.mxu0 0.0
      %371 = vmatprep.subr.mxu0 0.0
      %372 = vmatpush1.msra.mxu0 0.0
      %373 = vmatprep.subr.mxu0 0.0
      %374 = vmatpush1.msra.mxu0 0.0
      %375 = vmatprep.subr.mxu0 0.0
      %376 = vmatpush1.msra.mxu0 0.0
      %377 = vmatprep.subr.mxu0 0.0
      %378 = vmatpush1.msra.mxu0 0.0
      %379 = vmatprep.subr.mxu0 0.0
      %380 = vmatpush1.msra.mxu0 0.0
      %381 = vmatprep.mubr.f32.mxu0 0.0
      %382 = vmatmul.mubr.f32.gmra.mrb[0].mxu0 %v306
      %v383 = vpop.f32.mrb[0].mxu0
      %v384 = vadd.f32 %v287, %v383
      %v385 = vpop.f32.mrb[0].mxu0
      %386 = vmatprep.mubr.f32.mxu0 0.0
      %387 = vmatmul.mubr.f32.gmra.mrb[0].mxu0 %v309
      %v388 = vpop.f32.mrb[0].mxu0
      %v389 = vadd.f32 %v292, %v388
      %v390 = vpop.f32.mrb[0].mxu0
      %391 = vmatprep.mubr.f32.mxu0 0.0
      %392 = vmatmul.mubr.f32.gmra.mrb[0].mxu0 %v312
      %v393 = vpop.f32.mrb[0].mxu0
      %v394 = vadd.f32 %v297, %v393
      %v395 = vpop.f32.mrb[0].mxu0
      %396 = vmatprep.mubr.f32.mxu0 0.0
      %397 = vmatmul.mubr.f32.gmra.mrb[0].mxu0 %v315
      %v398 = vpop.f32.mrb[0].mxu0
      %v399 = vadd.f32 %v302, %v398
      %v400 = vpop.f32.mrb[0].mxu0
      %401 = vdwg.mxu0
      %v402 = vmax.f32 %v384, 0.0
      %v403 = vmax.f32 %v389, 0.0
      %v404 = vmax.f32 %v394, 0.0
      %v405 = vmax.f32 %v399, 0.0
      %s406 = smul.u32 %s84, 32
      %s407 = scalar_lea.vmem [#allocation2], %s406
      %408 = vst [vmem:[%s407] sm:$0xff] %v402
      %409 = vst [vmem:[%s407 + $0x8] sm:$0xff] %v403
      %410 = vst [vmem:[%s407 + $0x10] sm:$0xff] %v404
      %411 = vst [vmem:[%s407 + $0x18] sm:$0xff] %v405
      %vm412 = vcmask 261120
      %v414 = vsel %vm412, %v73, 0
      %416 = vmatprep.subr.mxu0 0.0
      %417 = vmatpush1.msra.mxu0 %v402
      %418 = vmatprep.subr.mxu0 0.0
      %419 = vmatpush1.msra.mxu0 %v403
      %420 = vmatprep.subr.mxu0 0.0
      %421 = vmatpush1.msra.mxu0 %v404
      %422 = vmatprep.subr.mxu0 0.0
      %423 = vmatpush1.msra.mxu0 %v405
      %424 = vmatprep.subr.mxu0 0.0
      %425 = vmatpush1.msra.mxu0 0.0
      %426 = vmatprep.subr.mxu0 0.0
      %427 = vmatpush1.msra.mxu0 0.0
      %428 = vmatprep.subr.mxu0 0.0
      %429 = vmatpush1.msra.mxu0 0.0
      %430 = vmatprep.subr.mxu0 0.0
      %431 = vmatpush1.msra.mxu0 0.0
      %432 = vmatprep.subr.mxu0 0.0
      %433 = vmatpush1.msra.mxu0 0.0
      %434 = vmatprep.subr.mxu0 0.0
      %435 = vmatpush1.msra.mxu0 0.0
      %436 = vmatprep.subr.mxu0 0.0
      %437 = vmatpush1.msra.mxu0 0.0
      %438 = vmatprep.subr.mxu0 0.0
      %439 = vmatpush1.msra.mxu0 0.0
      %440 = vmatprep.subr.mxu0 0.0
      %441 = vmatpush1.msra.mxu0 0.0
      %442 = vmatprep.subr.mxu0 0.0
      %443 = vmatpush1.msra.mxu0 0.0
      %444 = vmatprep.subr.mxu0 0.0
      %445 = vmatpush1.msra.mxu0 0.0
      %446 = vmatprep.subr.mxu0 0.0
      %447 = vmatpush1.msra.mxu0 0.0
      %448 = vmatprep.subr.mxu0 0.0
      %449 = vmatpush1.msra.mxu0 0.0
      %450 = vmatprep.subr.mxu0 0.0
      %451 = vmatpush1.msra.mxu0 0.0
      %452 = vmatprep.subr.mxu0 0.0
      %453 = vmatpush1.msra.mxu0 0.0
      %454 = vmatprep.subr.mxu0 0.0
      %455 = vmatpush1.msra.mxu0 0.0
      %456 = vmatprep.subr.mxu0 0.0
      %457 = vmatpush1.msra.mxu0 0.0
      %458 = vmatprep.subr.mxu0 0.0
      %459 = vmatpush1.msra.mxu0 0.0
      %460 = vmatprep.subr.mxu0 0.0
      %461 = vmatpush1.msra.mxu0 0.0
      %462 = vmatprep.subr.mxu0 0.0
      %463 = vmatpush1.msra.mxu0 0.0
      %464 = vmatprep.subr.mxu0 0.0
      %465 = vmatpush1.msra.mxu0 0.0
      %466 = vmatprep.subr.mxu0 0.0
      %467 = vmatpush1.msra.mxu0 0.0
      %468 = vmatprep.subr.mxu0 0.0
      %469 = vmatpush1.msra.mxu0 0.0
      %470 = vmatprep.subr.mxu0 0.0
      %471 = vmatpush1.msra.mxu0 0.0
      %472 = vmatprep.subr.mxu0 0.0
      %473 = vmatpush1.msra.mxu0 0.0
      %474 = vmatprep.subr.mxu0 0.0
      %475 = vmatpush1.msra.mxu0 0.0
      %476 = vmatprep.subr.mxu0 0.0
      %477 = vmatpush1.msra.mxu0 0.0
      %478 = vmatprep.subr.mxu0 0.0
      %479 = vmatpush1.msra.mxu0 0.0
      %480 = vmatprep.mubr.f32.mxu0 0.0
      %481 = vmatmul.mubr.f32.gmra.mrb[0].mxu0 %v414
      %v482 = vpop.f32.mrb[0].mxu0
      %v483 = vadd.f32 0.0, %v482
      %v484 = vpop.f32.mrb[0].mxu0
      %485 = vdwg.mxu0
      %v486 = vadd.f32 %v89, %v483
      %v487 = vmul.f32 %v402, %v402
      %v488 = vmul.f32 %v403, %v403
      %v489 = vmul.f32 %v404, %v404
      %v490 = vmul.f32 %v405, %v405
      %491 = vmatprep.subr.mxu0 0.0
      %492 = vmatpush1.msra.mxu0 %v487
      %493 = vmatprep.subr.mxu0 0.0
      %494 = vmatpush1.msra.mxu0 %v488
      %495 = vmatprep.subr.mxu0 0.0
      %496 = vmatpush1.msra.mxu0 %v489
      %497 = vmatprep.subr.mxu0 0.0
      %498 = vmatpush1.msra.mxu0 %v490
      %499 = vmatprep.subr.mxu0 0.0
      %500 = vmatpush1.msra.mxu0 0.0
      %501 = vmatprep.subr.mxu0 0.0
      %502 = vmatpush1.msra.mxu0 0.0
      %503 = vmatprep.subr.mxu0 0.0
      %504 = vmatpush1.msra.mxu0 0.0
      %505 = vmatprep.subr.mxu0 0.0
      %506 = vmatpush1.msra.mxu0 0.0
      %507 = vmatprep.subr.mxu0 0.0
      %508 = vmatpush1.msra.mxu0 0.0
      %509 = vmatprep.subr.mxu0 0.0
      %510 = vmatpush1.msra.mxu0 0.0
      %511 = vmatprep.subr.mxu0 0.0
      %512 = vmatpush1.msra.mxu0 0.0
      %513 = vmatprep.subr.mxu0 0.0
      %514 = vmatpush1.msra.mxu0 0.0
      %515 = vmatprep.subr.mxu0 0.0
      %516 = vmatpush1.msra.mxu0 0.0
      %517 = vmatprep.subr.mxu0 0.0
      %518 = vmatpush1.msra.mxu0 0.0
      %519 = vmatprep.subr.mxu0 0.0
      %520 = vmatpush1.msra.mxu0 0.0
      %521 = vmatprep.subr.mxu0 0.0
      %522 = vmatpush1.msra.mxu0 0.0
      %523 = vmatprep.subr.mxu0 0.0
      %524 = vmatpush1.msra.mxu0 0.0
      %525 = vmatprep.subr.mxu0 0.0
      %526 = vmatpush1.msra.mxu0 0.0
      %527 = vmatprep.subr.mxu0 0.0
      %528 = vmatpush1.msra.mxu0 0.0
      %529 = vmatprep.subr.mxu0 0.0
      %530 = vmatpush1.msra.mxu0 0.0
      %531 = vmatprep.subr.mxu0 0.0
      %532 = vmatpush1.msra.mxu0 0.0
      %533 = vmatprep.subr.mxu0 0.0
      %534 = vmatpush1.msra.mxu0 0.0
      %535 = vmatprep.subr.mxu0 0.0
      %536 = vmatpush1.msra.mxu0 0.0
      %537 = vmatprep.subr.mxu0 0.0
      %538 = vmatpush1.msra.mxu0 0.0
      %539 = vmatprep.subr.mxu0 0.0
      %540 = vmatpush1.msra.mxu0 0.0
      %541 = vmatprep.subr.mxu0 0.0
      %542 = vmatpush1.msra.mxu0 0.0
      %543 = vmatprep.subr.mxu0 0.0
      %544 = vmatpush1.msra.mxu0 0.0
      %545 = vmatprep.subr.mxu0 0.0
      %546 = vmatpush1.msra.mxu0 0.0
      %547 = vmatprep.subr.mxu0 0.0
      %548 = vmatpush1.msra.mxu0 0.0
      %549 = vmatprep.subr.mxu0 0.0
      %550 = vmatpush1.msra.mxu0 0.0
      %551 = vmatprep.subr.mxu0 0.0
      %552 = vmatpush1.msra.mxu0 0.0
      %553 = vmatprep.subr.mxu0 0.0
      %554 = vmatpush1.msra.mxu0 0.0
      %555 = vmatprep.mubr.f32.mxu0 0.0
      %556 = vmatmul.mubr.f32.gmra.mrb[0].mxu0 %v414
      %v557 = vpop.f32.mrb[0].mxu0
      %v558 = vadd.f32 0.0, %v557
      %v559 = vpop.f32.mrb[0].mxu0
      %560 = vdwg.mxu0
      %v561 = vadd.f32 %v90, %v558
    $region26: #{tpu_custom_call.1} parent=1 // loop_footer
      %s88 = sadd.s32 1, %s84
    $region27: #{tpu_custom_call.1} parent=1 // loop_footer_branch
      %83 = sbr.rel target = $region23
    $region28: #{tpu_custom_call.1} parent=1 // loop_exit
      _
    %v562 = vmul.f32 %v89, 0.015625
    %v563 = vmul.f32 %v90, 0.015625
    %v564 = vmul.f32 %v562, %v562
    %v565 = vsub.f32 %v563, %v564
    %v566 = vmax.f32 %v565, 0.0
    %v567 = vadd.f32 %v566, 1e-05
    %v568 = vrsqrt.pop %v567
    %vm569 = vcmask 31744
    %v571 = vsel %vm569, %v74, 0
    %v574 = vsel %vm569, %v75, 0
    %v577 = vsel %vm569, %v76, 0
    %v580 = vsel %vm569, %v77, 0
    %vm582 = vcmask 1043456
    %v584 = vsel %vm582, %v568, 0
    %586 = vmatprep.subr.mxu0 0.0
    %587 = vmatpush1.msra.mxu0 %v584
    %588 = vmatprep.subr.mxu0 0.0
    %589 = vmatpush1.msra.mxu0 0.0
    %590 = vmatprep.subr.mxu0 0.0
    %591 = vmatpush1.msra.mxu0 0.0
    %592 = vmatprep.subr.mxu0 0.0
    %593 = vmatpush1.msra.mxu0 0.0
    %594 = vmatprep.subr.mxu0 0.0
    %595 = vmatpush1.msra.mxu0 0.0
    %596 = vmatprep.subr.mxu0 0.0
    %597 = vmatpush1.msra.mxu0 0.0
    %598 = vmatprep.subr.mxu0 0.0
    %599 = vmatpush1.msra.mxu0 0.0
    %600 = vmatprep.subr.mxu0 0.0
    %601 = vmatpush1.msra.mxu0 0.0
    %602 = vmatprep.subr.mxu0 0.0
    %603 = vmatpush1.msra.mxu0 0.0
    %604 = vmatprep.subr.mxu0 0.0
    %605 = vmatpush1.msra.mxu0 0.0
    %606 = vmatprep.subr.mxu0 0.0
    %607 = vmatpush1.msra.mxu0 0.0
    %608 = vmatprep.subr.mxu0 0.0
    %609 = vmatpush1.msra.mxu0 0.0
    %610 = vmatprep.subr.mxu0 0.0
    %611 = vmatpush1.msra.mxu0 0.0
    %612 = vmatprep.subr.mxu0 0.0
    %613 = vmatpush1.msra.mxu0 0.0
    %614 = vmatprep.subr.mxu0 0.0
    %615 = vmatpush1.msra.mxu0 0.0
    %616 = vmatprep.subr.mxu0 0.0
    %617 = vmatpush1.msra.mxu0 0.0
    %618 = vmatprep.subr.mxu0 0.0
    %619 = vmatpush1.msra.mxu0 0.0
    %620 = vmatprep.subr.mxu0 0.0
    %621 = vmatpush1.msra.mxu0 0.0
    %622 = vmatprep.subr.mxu0 0.0
    %623 = vmatpush1.msra.mxu0 0.0
    %624 = vmatprep.subr.mxu0 0.0
    %625 = vmatpush1.msra.mxu0 0.0
    %626 = vmatprep.subr.mxu0 0.0
    %627 = vmatpush1.msra.mxu0 0.0
    %628 = vmatprep.subr.mxu0 0.0
    %629 = vmatpush1.msra.mxu0 0.0
    %630 = vmatprep.subr.mxu0 0.0
    %631 = vmatpush1.msra.mxu0 0.0
    %632 = vmatprep.subr.mxu0 0.0
    %633 = vmatpush1.msra.mxu0 0.0
    %634 = vmatprep.subr.mxu0 0.0
    %635 = vmatpush1.msra.mxu0 0.0
    %636 = vmatprep.subr.mxu0 0.0
    %637 = vmatpush1.msra.mxu0 0.0
    %638 = vmatprep.subr.mxu0 0.0
    %639 = vmatpush1.msra.mxu0 0.0
    %640 = vmatprep.subr.mxu0 0.0
    %641 = vmatpush1.msra.mxu0 0.0
    %642 = vmatprep.subr.mxu0 0.0
    %643 = vmatpush1.msra.mxu0 0.0
    %644 = vmatprep.subr.mxu0 0.0
    %645 = vmatpush1.msra.mxu0 0.0
    %646 = vmatprep.subr.mxu0 0.0
    %647 = vmatpush1.msra.mxu0 0.0
    %648 = vmatprep.subr.mxu0 0.0
    %649 = vmatpush1.msra.mxu0 0.0
    %650 = vmatprep.mubr.f32.mxu0 0.0
    %651 = vmatmul.mubr.f32.gmra.mrb[0].mxu0 %v571
    %v652 = vpop.f32.mrb[0].mxu0
    %v653 = vadd.f32 0.0, %v652
    %v654 = vpop.f32.mrb[0].mxu0
    %655 = vmatprep.mubr.f32.mxu0 0.0
    %656 = vmatmul.mubr.f32.gmra.mrb[0].mxu0 %v574
    %v657 = vpop.f32.mrb[0].mxu0
    %v658 = vadd.f32 0.0, %v657
    %v659 = vpop.f32.mrb[0].mxu0
    %660 = vmatprep.mubr.f32.mxu0 0.0
    %661 = vmatmul.mubr.f32.gmra.mrb[0].mxu0 %v577
    %v662 = vpop.f32.mrb[0].mxu0
    %v663 = vadd.f32 0.0, %v662
    %v664 = vpop.f32.mrb[0].mxu0
    %665 = vmatprep.mubr.f32.mxu0 0.0
    %666 = vmatmul.mubr.f32.gmra.mrb[0].mxu0 %v580
    %v667 = vpop.f32.mrb[0].mxu0
    %v668 = vadd.f32 0.0, %v667
    %v669 = vpop.f32.mrb[0].mxu0
    %670 = vdwg.mxu0
    %672 = vset.pattern.permute.xlu0 0
    %673 = vperm.xlu0 %672, %v35
    %v674 = vpop.permute.xlu0 %673
    %677 = vset.pattern.permute.xlu0 0
    %678 = vperm.xlu0 %677, %v36
    %v679 = vpop.permute.xlu0 %678
    %682 = vset.pattern.permute.xlu0 0
    %683 = vperm.xlu0 %682, %v37
    %v684 = vpop.permute.xlu0 %683
    %687 = vset.pattern.permute.xlu0 0
    %688 = vperm.xlu0 %687, %v38
    %v689 = vpop.permute.xlu0 %688
    %v691 = vmul.f32 %v653, %v674
    %v692 = vmul.f32 %v658, %v679
    %v693 = vmul.f32 %v663, %v684
    %v694 = vmul.f32 %v668, %v689
    %v696 = vsel %vm582, %v562, 0
    %698 = vmatprep.subr.mxu0 0.0
    %699 = vmatpush1.msra.mxu0 %v696
    %700 = vmatprep.subr.mxu0 0.0
    %701 = vmatpush1.msra.mxu0 0.0
    %702 = vmatprep.subr.mxu0 0.0
    %703 = vmatpush1.msra.mxu0 0.0
    %704 = vmatprep.subr.mxu0 0.0
    %705 = vmatpush1.msra.mxu0 0.0
    %706 = vmatprep.subr.mxu0 0.0
    %707 = vmatpush1.msra.mxu0 0.0
    %708 = vmatprep.subr.mxu0 0.0
    %709 = vmatpush1.msra.mxu0 0.0
    %710 = vmatprep.subr.mxu0 0.0
    %711 = vmatpush1.msra.mxu0 0.0
    %712 = vmatprep.subr.mxu0 0.0
    %713 = vmatpush1.msra.mxu0 0.0
    %714 = vmatprep.subr.mxu0 0.0
    %715 = vmatpush1.msra.mxu0 0.0
    %716 = vmatprep.subr.mxu0 0.0
    %717 = vmatpush1.msra.mxu0 0.0
    %718 = vmatprep.subr.mxu0 0.0
    %719 = vmatpush1.msra.mxu0 0.0
    %720 = vmatprep.subr.mxu0 0.0
    %721 = vmatpush1.msra.mxu0 0.0
    %722 = vmatprep.subr.mxu0 0.0
    %723 = vmatpush1.msra.mxu0 0.0
    %724 = vmatprep.subr.mxu0 0.0
    %725 = vmatpush1.msra.mxu0 0.0
    %726 = vmatprep.subr.mxu0 0.0
    %727 = vmatpush1.msra.mxu0 0.0
    %728 = vmatprep.subr.mxu0 0.0
    %729 = vmatpush1.msra.mxu0 0.0
    %730 = vmatprep.subr.mxu0 0.0
    %731 = vmatpush1.msra.mxu0 0.0
    %732 = vmatprep.subr.mxu0 0.0
    %733 = vmatpush1.msra.mxu0 0.0
    %734 = vmatprep.subr.mxu0 0.0
    %735 = vmatpush1.msra.mxu0 0.0
    %736 = vmatprep.subr.mxu0 0.0
    %737 = vmatpush1.msra.mxu0 0.0
    %738 = vmatprep.subr.mxu0 0.0
    %739 = vmatpush1.msra.mxu0 0.0
    %740 = vmatprep.subr.mxu0 0.0
    %741 = vmatpush1.msra.mxu0 0.0
    %742 = vmatprep.subr.mxu0 0.0
    %743 = vmatpush1.msra.mxu0 0.0
    %744 = vmatprep.subr.mxu0 0.0
    %745 = vmatpush1.msra.mxu0 0.0
    %746 = vmatprep.subr.mxu0 0.0
    %747 = vmatpush1.msra.mxu0 0.0
    %748 = vmatprep.subr.mxu0 0.0
    %749 = vmatpush1.msra.mxu0 0.0
    %750 = vmatprep.subr.mxu0 0.0
    %751 = vmatpush1.msra.mxu0 0.0
    %752 = vmatprep.subr.mxu0 0.0
    %753 = vmatpush1.msra.mxu0 0.0
    %754 = vmatprep.subr.mxu0 0.0
    %755 = vmatpush1.msra.mxu0 0.0
    %756 = vmatprep.subr.mxu0 0.0
    %757 = vmatpush1.msra.mxu0 0.0
    %758 = vmatprep.subr.mxu0 0.0
    %759 = vmatpush1.msra.mxu0 0.0
    %760 = vmatprep.subr.mxu0 0.0
    %761 = vmatpush1.msra.mxu0 0.0
    %762 = vmatprep.mubr.f32.mxu0 0.0
    %763 = vmatmul.mubr.f32.gmra.mrb[0].mxu0 %v571
    %v764 = vpop.f32.mrb[0].mxu0
    %v765 = vadd.f32 0.0, %v764
    %v766 = vpop.f32.mrb[0].mxu0
    %767 = vmatprep.mubr.f32.mxu0 0.0
    %768 = vmatmul.mubr.f32.gmra.mrb[0].mxu0 %v574
    %v769 = vpop.f32.mrb[0].mxu0
    %v770 = vadd.f32 0.0, %v769
    %v771 = vpop.f32.mrb[0].mxu0
    %772 = vmatprep.mubr.f32.mxu0 0.0
    %773 = vmatmul.mubr.f32.gmra.mrb[0].mxu0 %v577
    %v774 = vpop.f32.mrb[0].mxu0
    %v775 = vadd.f32 0.0, %v774
    %v776 = vpop.f32.mrb[0].mxu0
    %777 = vmatprep.mubr.f32.mxu0 0.0
    %778 = vmatmul.mubr.f32.gmra.mrb[0].mxu0 %v580
    %v779 = vpop.f32.mrb[0].mxu0
    %v780 = vadd.f32 0.0, %v779
    %v781 = vpop.f32.mrb[0].mxu0
    %782 = vdwg.mxu0
    %v783 = vmul.f32 %v765, %v691
    %v784 = vmul.f32 %v770, %v692
    %v785 = vmul.f32 %v775, %v693
    %v786 = vmul.f32 %v780, %v694
    %788 = vset.pattern.permute.xlu0 0
    %789 = vperm.xlu0 %788, %v39
    %v790 = vpop.permute.xlu0 %789
    %793 = vset.pattern.permute.xlu0 0
    %794 = vperm.xlu0 %793, %v40
    %v795 = vpop.permute.xlu0 %794
    %798 = vset.pattern.permute.xlu0 0
    %799 = vperm.xlu0 %798, %v41
    %v800 = vpop.permute.xlu0 %799
    %803 = vset.pattern.permute.xlu0 0
    %804 = vperm.xlu0 %803, %v42
    %v805 = vpop.permute.xlu0 %804
    %v807 = vsub.f32 %v790, %v783
    %v808 = vsub.f32 %v795, %v784
    %v809 = vsub.f32 %v800, %v785
    %v810 = vsub.f32 %v805, %v786
    %v811 = vld [vmem:[%s2] sm:$0xff]
    loop: start=0, step=1, limit=8
    $region29: #{tpu_custom_call.1} parent=1 // loop_pre_header
      _
    $region30: #{tpu_custom_call.1} parent=1 // loop_header
      %s813 = sphi 0, %s817
      %p814 = scmp.ge.s32.totalorder %s813, 8
    $region31: #{tpu_custom_call.1} parent=1 // loop_header_branch
      %816 = sbr.rel (%p814) target = $region35
    $region32: #{tpu_custom_call.1} parent=1 // loop_body
      %s818 = smul.u32 %s813, 32
      %s819 = scalar_lea.vmem %s1, %s818
      %v820 = vld [vmem:[%s819] sm:$0xff]
      %v821 = vld [vmem:[%s819 + $0x8] sm:$0xff]
      %v822 = vld [vmem:[%s819 + $0x10] sm:$0xff]
      %v823 = vld [vmem:[%s819 + $0x18] sm:$0xff]
      %vm824 = vcmask 64512
      %v826 = vsel %vm824, %v820, 0
      %v829 = vsel %vm824, %v821, 0
      %v832 = vsel %vm824, %v822, 0
      %v835 = vsel %vm824, %v823, 0
      %837 = vmatprep.subr.mxu0 0.0
      %838 = vmatpush1.msra.mxu0 %v811
      %839 = vmatprep.subr.mxu0 0.0
      %840 = vmatpush1.msra.mxu0 0.0
      %841 = vmatprep.subr.mxu0 0.0
      %842 = vmatpush1.msra.mxu0 0.0
      %843 = vmatprep.subr.mxu0 0.0
      %844 = vmatpush1.msra.mxu0 0.0
      %845 = vmatprep.subr.mxu0 0.0
      %846 = vmatpush1.msra.mxu0 0.0
      %847 = vmatprep.subr.mxu0 0.0
      %848 = vmatpush1.msra.mxu0 0.0
      %849 = vmatprep.subr.mxu0 0.0
      %850 = vmatpush1.msra.mxu0 0.0
      %851 = vmatprep.subr.mxu0 0.0
      %852 = vmatpush1.msra.mxu0 0.0
      %853 = vmatprep.subr.mxu0 0.0
      %854 = vmatpush1.msra.mxu0 0.0
      %855 = vmatprep.subr.mxu0 0.0
      %856 = vmatpush1.msra.mxu0 0.0
      %857 = vmatprep.subr.mxu0 0.0
      %858 = vmatpush1.msra.mxu0 0.0
      %859 = vmatprep.subr.mxu0 0.0
      %860 = vmatpush1.msra.mxu0 0.0
      %861 = vmatprep.subr.mxu0 0.0
      %862 = vmatpush1.msra.mxu0 0.0
      %863 = vmatprep.subr.mxu0 0.0
      %864 = vmatpush1.msra.mxu0 0.0
      %865 = vmatprep.subr.mxu0 0.0
      %866 = vmatpush1.msra.mxu0 0.0
      %867 = vmatprep.subr.mxu0 0.0
      %868 = vmatpush1.msra.mxu0 0.0
      %869 = vmatprep.subr.mxu0 0.0
      %870 = vmatpush1.msra.mxu0 0.0
      %871 = vmatprep.subr.mxu0 0.0
      %872 = vmatpush1.msra.mxu0 0.0
      %873 = vmatprep.subr.mxu0 0.0
      %874 = vmatpush1.msra.mxu0 0.0
      %875 = vmatprep.subr.mxu0 0.0
      %876 = vmatpush1.msra.mxu0 0.0
      %877 = vmatprep.subr.mxu0 0.0
      %878 = vmatpush1.msra.mxu0 0.0
      %879 = vmatprep.subr.mxu0 0.0
      %880 = vmatpush1.msra.mxu0 0.0
      %881 = vmatprep.subr.mxu0 0.0
      %882 = vmatpush1.msra.mxu0 0.0
      %883 = vmatprep.subr.mxu0 0.0
      %884 = vmatpush1.msra.mxu0 0.0
      %885 = vmatprep.subr.mxu0 0.0
      %886 = vmatpush1.msra.mxu0 0.0
      %887 = vmatprep.subr.mxu0 0.0
      %888 = vmatpush1.msra.mxu0 0.0
      %889 = vmatprep.subr.mxu0 0.0
      %890 = vmatpush1.msra.mxu0 0.0
      %891 = vmatprep.subr.mxu0 0.0
      %892 = vmatpush1.msra.mxu0 0.0
      %893 = vmatprep.subr.mxu0 0.0
      %894 = vmatpush1.msra.mxu0 0.0
      %895 = vmatprep.subr.mxu0 0.0
      %896 = vmatpush1.msra.mxu0 0.0
      %897 = vmatprep.subr.mxu0 0.0
      %898 = vmatpush1.msra.mxu0 0.0
      %899 = vmatprep.subr.mxu0 0.0
      %900 = vmatpush1.msra.mxu0 0.0
      %901 = vmatprep.mubr.f32.mxu0 0.0
      %902 = vmatmul.mubr.f32.gmra.mrb[0].mxu0 %v826
      %v903 = vpop.f32.mrb[0].mxu0
      %v904 = vadd.f32 %v807, %v903
      %v905 = vpop.f32.mrb[0].mxu0
      %906 = vmatprep.mubr.f32.mxu0 0.0
      %907 = vmatmul.mubr.f32.gmra.mrb[0].mxu0 %v829
      %v908 = vpop.f32.mrb[0].mxu0
      %v909 = vadd.f32 %v808, %v908
      %v910 = vpop.f32.mrb[0].mxu0
      %911 = vmatprep.mubr.f32.mxu0 0.0
      %912 = vmatmul.mubr.f32.gmra.mrb[0].mxu0 %v832
      %v913 = vpop.f32.mrb[0].mxu0
      %v914 = vadd.f32 %v809, %v913
      %v915 = vpop.f32.mrb[0].mxu0
      %916 = vmatprep.mubr.f32.mxu0 0.0
      %917 = vmatmul.mubr.f32.gmra.mrb[0].mxu0 %v835
      %v918 = vpop.f32.mrb[0].mxu0
      %v919 = vadd.f32 %v810, %v918
      %v920 = vpop.f32.mrb[0].mxu0
      %921 = vdwg.mxu0
      %s922 = scalar_lea.vmem [#allocation3], %s818
      %923 = vst [vmem:[%s922] sm:$0xff] %v904
      %924 = vst [vmem:[%s922 + $0x8] sm:$0xff] %v909
      %925 = vst [vmem:[%s922 + $0x10] sm:$0xff] %v914
      %926 = vst [vmem:[%s922 + $0x18] sm:$0xff] %v919
    $region33: #{tpu_custom_call.1} parent=1 // loop_footer
      %s817 = sadd.s32 1, %s813
    $region34: #{tpu_custom_call.1} parent=1 // loop_footer_branch
      %812 = sbr.rel target = $region30
    $region35: #{tpu_custom_call.1} parent=1 // loop_exit
      _
    loop: start=0, step=1, limit=8
    $region36: #{tpu_custom_call.1} parent=1 // loop_pre_header
      _
    $region37: #{tpu_custom_call.1} parent=1 // loop_header
      %s928 = sphi 0, %s932
      %p929 = scmp.ge.s32.totalorder %s928, 8
      %v933 = vphi -inf, %v1037
      %v934 = vphi 0.0, %v1045
      %v935 = vphi 0.0, %v1230
      %v936 = vphi 0.0, %v1231
      %v937 = vphi 0.0, %v1232
      %v938 = vphi 0.0, %v1233
    $region38: #{tpu_custom_call.1} parent=1 // loop_header_branch
      %931 = sbr.rel (%p929) target = $region42
    $region39: #{tpu_custom_call.1} parent=1 // loop_body
      %s939 = smul.u32 %s928, 32
      %s940 = scalar_lea.vmem [#allocation2], %s939
      %v941 = vld [vmem:[%s940] sm:$0xff]
      %v942 = vld [vmem:[%s940 + $0x8] sm:$0xff]
      %v943 = vld [vmem:[%s940 + $0x10] sm:$0xff]
      %v944 = vld [vmem:[%s940 + $0x18] sm:$0xff]
      %v945 = vmul.f32 %v941, %v691
      %v946 = vmul.f32 %v942, %v692
      %v947 = vmul.f32 %v943, %v693
      %v948 = vmul.f32 %v944, %v694
      %s949 = scalar_lea.vmem [#allocation3], %s939
      %v950 = vld [vmem:[%s949] sm:$0xff]
      %v951 = vld [vmem:[%s949 + $0x8] sm:$0xff]
      %v952 = vld [vmem:[%s949 + $0x10] sm:$0xff]
      %v953 = vld [vmem:[%s949 + $0x18] sm:$0xff]
      %v954 = vadd.f32 %v945, %v950
      %v955 = vadd.f32 %v946, %v951
      %v956 = vadd.f32 %v947, %v952
      %v957 = vadd.f32 %v948, %v953
      %959 = vset.pattern.permute.xlu0 0
      %960 = vperm.xlu0 %959, %v44
      %v961 = vpop.permute.xlu0 %960
      %vm963 = vcmask 261120
      %v965 = vsel %vm963, %v43, 0
      %967 = vmatprep.subr.mxu0 0.0
      %968 = vmatpush1.msra.mxu0 %v954
      %969 = vmatprep.subr.mxu0 0.0
      %970 = vmatpush1.msra.mxu0 %v955
      %971 = vmatprep.subr.mxu0 0.0
      %972 = vmatpush1.msra.mxu0 %v956
      %973 = vmatprep.subr.mxu0 0.0
      %974 = vmatpush1.msra.mxu0 %v957
      %975 = vmatprep.subr.mxu0 0.0
      %976 = vmatpush1.msra.mxu0 0.0
      %977 = vmatprep.subr.mxu0 0.0
      %978 = vmatpush1.msra.mxu0 0.0
      %979 = vmatprep.subr.mxu0 0.0
      %980 = vmatpush1.msra.mxu0 0.0
      %981 = vmatprep.subr.mxu0 0.0
      %982 = vmatpush1.msra.mxu0 0.0
      %983 = vmatprep.subr.mxu0 0.0
      %984 = vmatpush1.msra.mxu0 0.0
      %985 = vmatprep.subr.mxu0 0.0
      %986 = vmatpush1.msra.mxu0 0.0
      %987 = vmatprep.subr.mxu0 0.0
      %988 = vmatpush1.msra.mxu0 0.0
      %989 = vmatprep.subr.mxu0 0.0
      %990 = vmatpush1.msra.mxu0 0.0
      %991 = vmatprep.subr.mxu0 0.0
      %992 = vmatpush1.msra.mxu0 0.0
      %993 = vmatprep.subr.mxu0 0.0
      %994 = vmatpush1.msra.mxu0 0.0
      %995 = vmatprep.subr.mxu0 0.0
      %996 = vmatpush1.msra.mxu0 0.0
      %997 = vmatprep.subr.mxu0 0.0
      %998 = vmatpush1.msra.mxu0 0.0
      %999 = vmatprep.subr.mxu0 0.0
      %1000 = vmatpush1.msra.mxu0 0.0
      %1001 = vmatprep.subr.mxu0 0.0
      %1002 = vmatpush1.msra.mxu0 0.0
      %1003 = vmatprep.subr.mxu0 0.0
      %1004 = vmatpush1.msra.mxu0 0.0
      %1005 = vmatprep.subr.mxu0 0.0
      %1006 = vmatpush1.msra.mxu0 0.0
      %1007 = vmatprep.subr.mxu0 0.0
      %1008 = vmatpush1.msra.mxu0 0.0
      %1009 = vmatprep.subr.mxu0 0.0
      %1010 = vmatpush1.msra.mxu0 0.0
      %1011 = vmatprep.subr.mxu0 0.0
      %1012 = vmatpush1.msra.mxu0 0.0
      %1013 = vmatprep.subr.mxu0 0.0
      %1014 = vmatpush1.msra.mxu0 0.0
      %1015 = vmatprep.subr.mxu0 0.0
      %1016 = vmatpush1.msra.mxu0 0.0
      %1017 = vmatprep.subr.mxu0 0.0
      %1018 = vmatpush1.msra.mxu0 0.0
      %1019 = vmatprep.subr.mxu0 0.0
      %1020 = vmatpush1.msra.mxu0 0.0
      %1021 = vmatprep.subr.mxu0 0.0
      %1022 = vmatpush1.msra.mxu0 0.0
      %1023 = vmatprep.subr.mxu0 0.0
      %1024 = vmatpush1.msra.mxu0 0.0
      %1025 = vmatprep.subr.mxu0 0.0
      %1026 = vmatpush1.msra.mxu0 0.0
      %1027 = vmatprep.subr.mxu0 0.0
      %1028 = vmatpush1.msra.mxu0 0.0
      %1029 = vmatprep.subr.mxu0 0.0
      %1030 = vmatpush1.msra.mxu0 0.0
      %1031 = vmatprep.mubr.f32.mxu0 0.0
      %1032 = vmatmul.mubr.f32.gmra.mrb[0].mxu0 %v965
      %v1033 = vpop.f32.mrb[0].mxu0
      %v1034 = vadd.f32 %v961, %v1033
      %v1035 = vpop.f32.mrb[0].mxu0
      %1036 = vdwg.mxu0
      %v1037 = vmax.f32 %v933, %v1034
      %v1038 = vsub.f32 %v933, %v1037
      %v1039 = vmul.f32 %v1038, 1.442695
      %v1040 = vpow.pop %v1039
      %v1041 = vsub.f32 %v1034, %v1037
      %v1042 = vmul.f32 %v1041, 1.442695
      %v1043 = vpow.pop %v1042
      %v1044 = vmul.f32 %v1040, %v934
      %v1045 = vadd.f32 %v1044, %v1043
      %v1047 = vsel %vm582, %v1040, 0
      %1049 = vmatprep.subr.mxu0 0.0
      %1050 = vmatpush1.msra.mxu0 %v1047
      %1051 = vmatprep.subr.mxu0 0.0
      %1052 = vmatpush1.msra.mxu0 0.0
      %1053 = vmatprep.subr.mxu0 0.0
      %1054 = vmatpush1.msra.mxu0 0.0
      %1055 = vmatprep.subr.mxu0 0.0
      %1056 = vmatpush1.msra.mxu0 0.0
      %1057 = vmatprep.subr.mxu0 0.0
      %1058 = vmatpush1.msra.mxu0 0.0
      %1059 = vmatprep.subr.mxu0 0.0
      %1060 = vmatpush1.msra.mxu0 0.0
      %1061 = vmatprep.subr.mxu0 0.0
      %1062 = vmatpush1.msra.mxu0 0.0
      %1063 = vmatprep.subr.mxu0 0.0
      %1064 = vmatpush1.msra.mxu0 0.0
      %1065 = vmatprep.subr.mxu0 0.0
      %1066 = vmatpush1.msra.mxu0 0.0
      %1067 = vmatprep.subr.mxu0 0.0
      %1068 = vmatpush1.msra.mxu0 0.0
      %1069 = vmatprep.subr.mxu0 0.0
      %1070 = vmatpush1.msra.mxu0 0.0
      %1071 = vmatprep.subr.mxu0 0.0
      %1072 = vmatpush1.msra.mxu0 0.0
      %1073 = vmatprep.subr.mxu0 0.0
      %1074 = vmatpush1.msra.mxu0 0.0
      %1075 = vmatprep.subr.mxu0 0.0
      %1076 = vmatpush1.msra.mxu0 0.0
      %1077 = vmatprep.subr.mxu0 0.0
      %1078 = vmatpush1.msra.mxu0 0.0
      %1079 = vmatprep.subr.mxu0 0.0
      %1080 = vmatpush1.msra.mxu0 0.0
      %1081 = vmatprep.subr.mxu0 0.0
      %1082 = vmatpush1.msra.mxu0 0.0
      %1083 = vmatprep.subr.mxu0 0.0
      %1084 = vmatpush1.msra.mxu0 0.0
      %1085 = vmatprep.subr.mxu0 0.0
      %1086 = vmatpush1.msra.mxu0 0.0
      %1087 = vmatprep.subr.mxu0 0.0
      %1088 = vmatpush1.msra.mxu0 0.0
      %1089 = vmatprep.subr.mxu0 0.0
      %1090 = vmatpush1.msra.mxu0 0.0
      %1091 = vmatprep.subr.mxu0 0.0
      %1092 = vmatpush1.msra.mxu0 0.0
      %1093 = vmatprep.subr.mxu0 0.0
      %1094 = vmatpush1.msra.mxu0 0.0
      %1095 = vmatprep.subr.mxu0 0.0
      %1096 = vmatpush1.msra.mxu0 0.0
      %1097 = vmatprep.subr.mxu0 0.0
      %1098 = vmatpush1.msra.mxu0 0.0
      %1099 = vmatprep.subr.mxu0 0.0
      %1100 = vmatpush1.msra.mxu0 0.0
      %1101 = vmatprep.subr.mxu0 0.0
      %1102 = vmatpush1.msra.mxu0 0.0
      %1103 = vmatprep.subr.mxu0 0.0
      %1104 = vmatpush1.msra.mxu0 0.0
      %1105 = vmatprep.subr.mxu0 0.0
      %1106 = vmatpush1.msra.mxu0 0.0
      %1107 = vmatprep.subr.mxu0 0.0
      %1108 = vmatpush1.msra.mxu0 0.0
      %1109 = vmatprep.subr.mxu0 0.0
      %1110 = vmatpush1.msra.mxu0 0.0
      %1111 = vmatprep.subr.mxu0 0.0
      %1112 = vmatpush1.msra.mxu0 0.0
      %1113 = vmatprep.mubr.f32.mxu0 0.0
      %1114 = vmatmul.mubr.f32.gmra.mrb[0].mxu0 %v571
      %v1115 = vpop.f32.mrb[0].mxu0
      %v1116 = vadd.f32 0.0, %v1115
      %v1117 = vpop.f32.mrb[0].mxu0
      %1118 = vmatprep.mubr.f32.mxu0 0.0
      %1119 = vmatmul.mubr.f32.gmra.mrb[0].mxu0 %v574
      %v1120 = vpop.f32.mrb[0].mxu0
      %v1121 = vadd.f32 0.0, %v1120
      %v1122 = vpop.f32.mrb[0].mxu0
      %1123 = vmatprep.mubr.f32.mxu0 0.0
      %1124 = vmatmul.mubr.f32.gmra.mrb[0].mxu0 %v577
      %v1125 = vpop.f32.mrb[0].mxu0
      %v1126 = vadd.f32 0.0, %v1125
      %v1127 = vpop.f32.mrb[0].mxu0
      %1128 = vmatprep.mubr.f32.mxu0 0.0
      %1129 = vmatmul.mubr.f32.gmra.mrb[0].mxu0 %v580
      %v1130 = vpop.f32.mrb[0].mxu0
      %v1131 = vadd.f32 0.0, %v1130
      %v1132 = vpop.f32.mrb[0].mxu0
      %1133 = vdwg.mxu0
      %v1135 = vsel %vm582, %v1043, 0
      %1137 = vmatprep.subr.mxu0 0.0
      %1138 = vmatpush1.msra.mxu0 %v1135
      %1139 = vmatprep.subr.mxu0 0.0
      %1140 = vmatpush1.msra.mxu0 0.0
      %1141 = vmatprep.subr.mxu0 0.0
      %1142 = vmatpush1.msra.mxu0 0.0
      %1143 = vmatprep.subr.mxu0 0.0
      %1144 = vmatpush1.msra.mxu0 0.0
      %1145 = vmatprep.subr.mxu0 0.0
      %1146 = vmatpush1.msra.mxu0 0.0
      %1147 = vmatprep.subr.mxu0 0.0
      %1148 = vmatpush1.msra.mxu0 0.0
      %1149 = vmatprep.subr.mxu0 0.0
      %1150 = vmatpush1.msra.mxu0 0.0
      %1151 = vmatprep.subr.mxu0 0.0
      %1152 = vmatpush1.msra.mxu0 0.0
      %1153 = vmatprep.subr.mxu0 0.0
      %1154 = vmatpush1.msra.mxu0 0.0
      %1155 = vmatprep.subr.mxu0 0.0
      %1156 = vmatpush1.msra.mxu0 0.0
      %1157 = vmatprep.subr.mxu0 0.0
      %1158 = vmatpush1.msra.mxu0 0.0
      %1159 = vmatprep.subr.mxu0 0.0
      %1160 = vmatpush1.msra.mxu0 0.0
      %1161 = vmatprep.subr.mxu0 0.0
      %1162 = vmatpush1.msra.mxu0 0.0
      %1163 = vmatprep.subr.mxu0 0.0
      %1164 = vmatpush1.msra.mxu0 0.0
      %1165 = vmatprep.subr.mxu0 0.0
      %1166 = vmatpush1.msra.mxu0 0.0
      %1167 = vmatprep.subr.mxu0 0.0
      %1168 = vmatpush1.msra.mxu0 0.0
      %1169 = vmatprep.subr.mxu0 0.0
      %1170 = vmatpush1.msra.mxu0 0.0
      %1171 = vmatprep.subr.mxu0 0.0
      %1172 = vmatpush1.msra.mxu0 0.0
      %1173 = vmatprep.subr.mxu0 0.0
      %1174 = vmatpush1.msra.mxu0 0.0
      %1175 = vmatprep.subr.mxu0 0.0
      %1176 = vmatpush1.msra.mxu0 0.0
      %1177 = vmatprep.subr.mxu0 0.0
      %1178 = vmatpush1.msra.mxu0 0.0
      %1179 = vmatprep.subr.mxu0 0.0
      %1180 = vmatpush1.msra.mxu0 0.0
      %1181 = vmatprep.subr.mxu0 0.0
      %1182 = vmatpush1.msra.mxu0 0.0
      %1183 = vmatprep.subr.mxu0 0.0
      %1184 = vmatpush1.msra.mxu0 0.0
      %1185 = vmatprep.subr.mxu0 0.0
      %1186 = vmatpush1.msra.mxu0 0.0
      %1187 = vmatprep.subr.mxu0 0.0
      %1188 = vmatpush1.msra.mxu0 0.0
      %1189 = vmatprep.subr.mxu0 0.0
      %1190 = vmatpush1.msra.mxu0 0.0
      %1191 = vmatprep.subr.mxu0 0.0
      %1192 = vmatpush1.msra.mxu0 0.0
      %1193 = vmatprep.subr.mxu0 0.0
      %1194 = vmatpush1.msra.mxu0 0.0
      %1195 = vmatprep.subr.mxu0 0.0
      %1196 = vmatpush1.msra.mxu0 0.0
      %1197 = vmatprep.subr.mxu0 0.0
      %1198 = vmatpush1.msra.mxu0 0.0
      %1199 = vmatprep.subr.mxu0 0.0
      %1200 = vmatpush1.msra.mxu0 0.0
      %1201 = vmatprep.mubr.f32.mxu0 0.0
      %1202 = vmatmul.mubr.f32.gmra.mrb[0].mxu0 %v571
      %v1203 = vpop.f32.mrb[0].mxu0
      %v1204 = vadd.f32 0.0, %v1203
      %v1205 = vpop.f32.mrb[0].mxu0
      %1206 = vmatprep.mubr.f32.mxu0 0.0
      %1207 = vmatmul.mubr.f32.gmra.mrb[0].mxu0 %v574
      %v1208 = vpop.f32.mrb[0].mxu0
      %v1209 = vadd.f32 0.0, %v1208
      %v1210 = vpop.f32.mrb[0].mxu0
      %1211 = vmatprep.mubr.f32.mxu0 0.0
      %1212 = vmatmul.mubr.f32.gmra.mrb[0].mxu0 %v577
      %v1213 = vpop.f32.mrb[0].mxu0
      %v1214 = vadd.f32 0.0, %v1213
      %v1215 = vpop.f32.mrb[0].mxu0
      %1216 = vmatprep.mubr.f32.mxu0 0.0
      %1217 = vmatmul.mubr.f32.gmra.mrb[0].mxu0 %v580
      %v1218 = vpop.f32.mrb[0].mxu0
      %v1219 = vadd.f32 0.0, %v1218
      %v1220 = vpop.f32.mrb[0].mxu0
      %1221 = vdwg.mxu0
      %v1222 = vmul.f32 %v1116, %v935
      %v1223 = vmul.f32 %v1121, %v936
      %v1224 = vmul.f32 %v1126, %v937
      %v1225 = vmul.f32 %v1131, %v938
      %v1226 = vmul.f32 %v1204, %v954
      %v1227 = vmul.f32 %v1209, %v955
      %v1228 = vmul.f32 %v1214, %v956
      %v1229 = vmul.f32 %v1219, %v957
      %v1230 = vadd.f32 %v1222, %v1226
      %v1231 = vadd.f32 %v1223, %v1227
      %v1232 = vadd.f32 %v1224, %v1228
      %v1233 = vadd.f32 %v1225, %v1229
    $region40: #{tpu_custom_call.1} parent=1 // loop_footer
      %s932 = sadd.s32 1, %s928
    $region41: #{tpu_custom_call.1} parent=1 // loop_footer_branch
      %927 = sbr.rel target = $region37
    $region42: #{tpu_custom_call.1} parent=1 // loop_exit
      _
    %v1234 = vrcp.pop %v934
    %v1235 = vmul.f32 %v934, %v1234
    %v1236 = vsub.f32 2.0, %v1235
    %v1237 = vmul.f32 %v1234, %v1236
    %v1239 = vsel %vm582, %v1237, 0
    %1241 = vmatprep.subr.mxu0 0.0
    %1242 = vmatpush1.msra.mxu0 %v1239
    %1243 = vmatprep.subr.mxu0 0.0
    %1244 = vmatpush1.msra.mxu0 0.0
    %1245 = vmatprep.subr.mxu0 0.0
    %1246 = vmatpush1.msra.mxu0 0.0
    %1247 = vmatprep.subr.mxu0 0.0
    %1248 = vmatpush1.msra.mxu0 0.0
    %1249 = vmatprep.subr.mxu0 0.0
    %1250 = vmatpush1.msra.mxu0 0.0
    %1251 = vmatprep.subr.mxu0 0.0
    %1252 = vmatpush1.msra.mxu0 0.0
    %1253 = vmatprep.subr.mxu0 0.0
    %1254 = vmatpush1.msra.mxu0 0.0
    %1255 = vmatprep.subr.mxu0 0.0
    %1256 = vmatpush1.msra.mxu0 0.0
    %1257 = vmatprep.subr.mxu0 0.0
    %1258 = vmatpush1.msra.mxu0 0.0
    %1259 = vmatprep.subr.mxu0 0.0
    %1260 = vmatpush1.msra.mxu0 0.0
    %1261 = vmatprep.subr.mxu0 0.0
    %1262 = vmatpush1.msra.mxu0 0.0
    %1263 = vmatprep.subr.mxu0 0.0
    %1264 = vmatpush1.msra.mxu0 0.0
    %1265 = vmatprep.subr.mxu0 0.0
    %1266 = vmatpush1.msra.mxu0 0.0
    %1267 = vmatprep.subr.mxu0 0.0
    %1268 = vmatpush1.msra.mxu0 0.0
    %1269 = vmatprep.subr.mxu0 0.0
    %1270 = vmatpush1.msra.mxu0 0.0
    %1271 = vmatprep.subr.mxu0 0.0
    %1272 = vmatpush1.msra.mxu0 0.0
    %1273 = vmatprep.subr.mxu0 0.0
    %1274 = vmatpush1.msra.mxu0 0.0
    %1275 = vmatprep.subr.mxu0 0.0
    %1276 = vmatpush1.msra.mxu0 0.0
    %1277 = vmatprep.subr.mxu0 0.0
    %1278 = vmatpush1.msra.mxu0 0.0
    %1279 = vmatprep.subr.mxu0 0.0
    %1280 = vmatpush1.msra.mxu0 0.0
    %1281 = vmatprep.subr.mxu0 0.0
    %1282 = vmatpush1.msra.mxu0 0.0
    %1283 = vmatprep.subr.mxu0 0.0
    %1284 = vmatpush1.msra.mxu0 0.0
    %1285 = vmatprep.subr.mxu0 0.0
    %1286 = vmatpush1.msra.mxu0 0.0
    %1287 = vmatprep.subr.mxu0 0.0
    %1288 = vmatpush1.msra.mxu0 0.0
    %1289 = vmatprep.subr.mxu0 0.0
    %1290 = vmatpush1.msra.mxu0 0.0
    %1291 = vmatprep.subr.mxu0 0.0
    %1292 = vmatpush1.msra.mxu0 0.0
    %1293 = vmatprep.subr.mxu0 0.0
    %1294 = vmatpush1.msra.mxu0 0.0
    %1295 = vmatprep.subr.mxu0 0.0
    %1296 = vmatpush1.msra.mxu0 0.0
    %1297 = vmatprep.subr.mxu0 0.0
    %1298 = vmatpush1.msra.mxu0 0.0
    %1299 = vmatprep.subr.mxu0 0.0
    %1300 = vmatpush1.msra.mxu0 0.0
    %1301 = vmatprep.subr.mxu0 0.0
    %1302 = vmatpush1.msra.mxu0 0.0
    %1303 = vmatprep.subr.mxu0 0.0
    %1304 = vmatpush1.msra.mxu0 0.0
    %1305 = vmatprep.mubr.f32.mxu0 0.0
    %1306 = vmatmul.mubr.f32.gmra.mrb[0].mxu0 %v571
    %v1307 = vpop.f32.mrb[0].mxu0
    %v1308 = vadd.f32 0.0, %v1307
    %v1309 = vpop.f32.mrb[0].mxu0
    %1310 = vmatprep.mubr.f32.mxu0 0.0
    %1311 = vmatmul.mubr.f32.gmra.mrb[0].mxu0 %v574
    %v1312 = vpop.f32.mrb[0].mxu0
    %v1313 = vadd.f32 0.0, %v1312
    %v1314 = vpop.f32.mrb[0].mxu0
    %1315 = vmatprep.mubr.f32.mxu0 0.0
    %1316 = vmatmul.mubr.f32.gmra.mrb[0].mxu0 %v577
    %v1317 = vpop.f32.mrb[0].mxu0
    %v1318 = vadd.f32 0.0, %v1317
    %v1319 = vpop.f32.mrb[0].mxu0
    %1320 = vmatprep.mubr.f32.mxu0 0.0
    %1321 = vmatmul.mubr.f32.gmra.mrb[0].mxu0 %v580
    %v1322 = vpop.f32.mrb[0].mxu0
    %v1323 = vadd.f32 0.0, %v1322
    %v1324 = vpop.f32.mrb[0].mxu0
    %1325 = vdwg.mxu0
    %v1326 = vmul.f32 %v935, %v1308
    %v1327 = vmul.f32 %v936, %v1313
    %v1328 = vmul.f32 %v937, %v1318
    %v1329 = vmul.f32 %v938, %v1323
    %1331 = vset.pattern.permute.xlu0 0
    %1332 = vperm.xlu0 %1331, %v51
    %v1333 = vpop.permute.xlu0 %1332
    %1336 = vset.pattern.permute.xlu0 0
    %1337 = vperm.xlu0 %1336, %v52
    %v1338 = vpop.permute.xlu0 %1337
    %1341 = vset.pattern.permute.xlu0 0
    %1342 = vperm.xlu0 %1341, %v53
    %v1343 = vpop.permute.xlu0 %1342
    %1346 = vset.pattern.permute.xlu0 0
    %1347 = vperm.xlu0 %1346, %v54
    %v1348 = vpop.permute.xlu0 %1347
    %1351 = vset.pattern.permute.xlu0 0
    %1352 = vperm.xlu0 %1351, %v55
    %v1353 = vpop.permute.xlu0 %1352
    %1356 = vset.pattern.permute.xlu0 0
    %1357 = vperm.xlu0 %1356, %v56
    %v1358 = vpop.permute.xlu0 %1357
    %vm1360 = vcmask 261120
    %v1362 = vsel %vm1360, %v45, 0
    %v1365 = vsel %vm1360, %v46, 0
    %v1368 = vsel %vm1360, %v47, 0
    %v1371 = vsel %vm1360, %v48, 0
    %v1374 = vsel %vm1360, %v49, 0
    %v1377 = vsel %vm1360, %v50, 0
    %1379 = vmatprep.subr.mxu0 0.0
    %1380 = vmatpush1.msra.mxu0 %v1326
    %1381 = vmatprep.subr.mxu0 0.0
    %1382 = vmatpush1.msra.mxu0 %v1327
    %1383 = vmatprep.subr.mxu0 0.0
    %1384 = vmatpush1.msra.mxu0 %v1328
    %1385 = vmatprep.subr.mxu0 0.0
    %1386 = vmatpush1.msra.mxu0 %v1329
    %1387 = vmatprep.subr.mxu0 0.0
    %1388 = vmatpush1.msra.mxu0 0.0
    %1389 = vmatprep.subr.mxu0 0.0
    %1390 = vmatpush1.msra.mxu0 0.0
    %1391 = vmatprep.subr.mxu0 0.0
    %1392 = vmatpush1.msra.mxu0 0.0
    %1393 = vmatprep.subr.mxu0 0.0
    %1394 = vmatpush1.msra.mxu0 0.0
    %1395 = vmatprep.subr.mxu0 0.0
    %1396 = vmatpush1.msra.mxu0 0.0
    %1397 = vmatprep.subr.mxu0 0.0
    %1398 = vmatpush1.msra.mxu0 0.0
    %1399 = vmatprep.subr.mxu0 0.0
    %1400 = vmatpush1.msra.mxu0 0.0
    %1401 = vmatprep.subr.mxu0 0.0
    %1402 = vmatpush1.msra.mxu0 0.0
    %1403 = vmatprep.subr.mxu0 0.0
    %1404 = vmatpush1.msra.mxu0 0.0
    %1405 = vmatprep.subr.mxu0 0.0
    %1406 = vmatpush1.msra.mxu0 0.0
    %1407 = vmatprep.subr.mxu0 0.0
    %1408 = vmatpush1.msra.mxu0 0.0
    %1409 = vmatprep.subr.mxu0 0.0
    %1410 = vmatpush1.msra.mxu0 0.0
    %1411 = vmatprep.subr.mxu0 0.0
    %1412 = vmatpush1.msra.mxu0 0.0
    %1413 = vmatprep.subr.mxu0 0.0
    %1414 = vmatpush1.msra.mxu0 0.0
    %1415 = vmatprep.subr.mxu0 0.0
    %1416 = vmatpush1.msra.mxu0 0.0
    %1417 = vmatprep.subr.mxu0 0.0
    %1418 = vmatpush1.msra.mxu0 0.0
    %1419 = vmatprep.subr.mxu0 0.0
    %1420 = vmatpush1.msra.mxu0 0.0
    %1421 = vmatprep.subr.mxu0 0.0
    %1422 = vmatpush1.msra.mxu0 0.0
    %1423 = vmatprep.subr.mxu0 0.0
    %1424 = vmatpush1.msra.mxu0 0.0
    %1425 = vmatprep.subr.mxu0 0.0
    %1426 = vmatpush1.msra.mxu0 0.0
    %1427 = vmatprep.subr.mxu0 0.0
    %1428 = vmatpush1.msra.mxu0 0.0
    %1429 = vmatprep.subr.mxu0 0.0
    %1430 = vmatpush1.msra.mxu0 0.0
    %1431 = vmatprep.subr.mxu0 0.0
    %1432 = vmatpush1.msra.mxu0 0.0
    %1433 = vmatprep.subr.mxu0 0.0
    %1434 = vmatpush1.msra.mxu0 0.0
    %1435 = vmatprep.subr.mxu0 0.0
    %1436 = vmatpush1.msra.mxu0 0.0
    %1437 = vmatprep.subr.mxu0 0.0
    %1438 = vmatpush1.msra.mxu0 0.0
    %1439 = vmatprep.subr.mxu0 0.0
    %1440 = vmatpush1.msra.mxu0 0.0
    %1441 = vmatprep.subr.mxu0 0.0
    %1442 = vmatpush1.msra.mxu0 0.0
    %1443 = vmatprep.mubr.f32.mxu0 0.0
    %1444 = vmatmul.mubr.f32.gmra.mrb[0].mxu0 %v1362
    %v1445 = vpop.f32.mrb[0].mxu0
    %v1446 = vadd.f32 %v1333, %v1445
    %v1447 = vpop.f32.mrb[0].mxu0
    %1448 = vmatprep.mubr.f32.mxu0 0.0
    %1449 = vmatmul.mubr.f32.gmra.mrb[0].mxu0 %v1365
    %v1450 = vpop.f32.mrb[0].mxu0
    %v1451 = vadd.f32 %v1338, %v1450
    %v1452 = vpop.f32.mrb[0].mxu0
    %1453 = vmatprep.mubr.f32.mxu0 0.0
    %1454 = vmatmul.mubr.f32.gmra.mrb[0].mxu0 %v1368
    %v1455 = vpop.f32.mrb[0].mxu0
    %v1456 = vadd.f32 %v1343, %v1455
    %v1457 = vpop.f32.mrb[0].mxu0
    %1458 = vmatprep.mubr.f32.mxu0 0.0
    %1459 = vmatmul.mubr.f32.gmra.mrb[0].mxu0 %v1371
    %v1460 = vpop.f32.mrb[0].mxu0
    %v1461 = vadd.f32 %v1348, %v1460
    %v1462 = vpop.f32.mrb[0].mxu0
    %1463 = vmatprep.mubr.f32.mxu0 0.0
    %1464 = vmatmul.mubr.f32.gmra.mrb[0].mxu0 %v1374
    %v1465 = vpop.f32.mrb[0].mxu0
    %v1466 = vadd.f32 %v1353, %v1465
    %v1467 = vpop.f32.mrb[0].mxu0
    %1468 = vmatprep.mubr.f32.mxu0 0.0
    %1469 = vmatmul.mubr.f32.gmra.mrb[0].mxu0 %v1377
    %v1470 = vpop.f32.mrb[0].mxu0
    %v1471 = vadd.f32 %v1358, %v1470
    %v1472 = vpop.f32.mrb[0].mxu0
    %1473 = vdwg.mxu0
    %v1474 = vmax.f32 %v1446, 0.0
    %v1475 = vmax.f32 %v1451, 0.0
    %v1476 = vmax.f32 %v1456, 0.0
    %v1477 = vmax.f32 %v1461, 0.0
    %v1478 = vmax.f32 %v1466, 0.0
    %v1479 = vmax.f32 %v1471, 0.0
    %1481 = vset.pattern.permute.xlu0 0
    %1482 = vperm.xlu0 %1481, %v61
    %v1483 = vpop.permute.xlu0 %1482
    %1486 = vset.pattern.permute.xlu0 0
    %1487 = vperm.xlu0 %1486, %v62
    %v1488 = vpop.permute.xlu0 %1487
    %1491 = vset.pattern.permute.xlu0 0
    %1492 = vperm.xlu0 %1491, %v63
    %v1493 = vpop.permute.xlu0 %1492
    %1496 = vset.pattern.permute.xlu0 0
    %1497 = vperm.xlu0 %1496, %v64
    %v1498 = vpop.permute.xlu0 %1497
    %vm1500 = vcmask 392192
    %v1502 = vsel %vm1500, %v57, 0
    %v1505 = vsel %vm1500, %v58, 0
    %v1508 = vsel %vm1500, %v59, 0
    %v1511 = vsel %vm1500, %v60, 0
    %1513 = vmatprep.subr.mxu0 0.0
    %1514 = vmatpush1.msra.mxu0 %v1474
    %1515 = vmatprep.subr.mxu0 0.0
    %1516 = vmatpush1.msra.mxu0 %v1475
    %1517 = vmatprep.subr.mxu0 0.0
    %1518 = vmatpush1.msra.mxu0 %v1476
    %1519 = vmatprep.subr.mxu0 0.0
    %1520 = vmatpush1.msra.mxu0 %v1477
    %1521 = vmatprep.subr.mxu0 0.0
    %1522 = vmatpush1.msra.mxu0 %v1478
    %1523 = vmatprep.subr.mxu0 0.0
    %1524 = vmatpush1.msra.mxu0 %v1479
    %1525 = vmatprep.subr.mxu0 0.0
    %1526 = vmatpush1.msra.mxu0 0.0
    %1527 = vmatprep.subr.mxu0 0.0
    %1528 = vmatpush1.msra.mxu0 0.0
    %1529 = vmatprep.subr.mxu0 0.0
    %1530 = vmatpush1.msra.mxu0 0.0
    %1531 = vmatprep.subr.mxu0 0.0
    %1532 = vmatpush1.msra.mxu0 0.0
    %1533 = vmatprep.subr.mxu0 0.0
    %1534 = vmatpush1.msra.mxu0 0.0
    %1535 = vmatprep.subr.mxu0 0.0
    %1536 = vmatpush1.msra.mxu0 0.0
    %1537 = vmatprep.subr.mxu0 0.0
    %1538 = vmatpush1.msra.mxu0 0.0
    %1539 = vmatprep.subr.mxu0 0.0
    %1540 = vmatpush1.msra.mxu0 0.0
    %1541 = vmatprep.subr.mxu0 0.0
    %1542 = vmatpush1.msra.mxu0 0.0
    %1543 = vmatprep.subr.mxu0 0.0
    %1544 = vmatpush1.msra.mxu0 0.0
    %1545 = vmatprep.subr.mxu0 0.0
    %1546 = vmatpush1.msra.mxu0 0.0
    %1547 = vmatprep.subr.mxu0 0.0
    %1548 = vmatpush1.msra.mxu0 0.0
    %1549 = vmatprep.subr.mxu0 0.0
    %1550 = vmatpush1.msra.mxu0 0.0
    %1551 = vmatprep.subr.mxu0 0.0
    %1552 = vmatpush1.msra.mxu0 0.0
    %1553 = vmatprep.subr.mxu0 0.0
    %1554 = vmatpush1.msra.mxu0 0.0
    %1555 = vmatprep.subr.mxu0 0.0
    %1556 = vmatpush1.msra.mxu0 0.0
    %1557 = vmatprep.subr.mxu0 0.0
    %1558 = vmatpush1.msra.mxu0 0.0
    %1559 = vmatprep.subr.mxu0 0.0
    %1560 = vmatpush1.msra.mxu0 0.0
    %1561 = vmatprep.subr.mxu0 0.0
    %1562 = vmatpush1.msra.mxu0 0.0
    %1563 = vmatprep.subr.mxu0 0.0
    %1564 = vmatpush1.msra.mxu0 0.0
    %1565 = vmatprep.subr.mxu0 0.0
    %1566 = vmatpush1.msra.mxu0 0.0
    %1567 = vmatprep.subr.mxu0 0.0
    %1568 = vmatpush1.msra.mxu0 0.0
    %1569 = vmatprep.subr.mxu0 0.0
    %1570 = vmatpush1.msra.mxu0 0.0
    %1571 = vmatprep.subr.mxu0 0.0
    %1572 = vmatpush1.msra.mxu0 0.0
    %1573 = vmatprep.subr.mxu0 0.0
    %1574 = vmatpush1.msra.mxu0 0.0
    %1575 = vmatprep.subr.mxu0 0.0
    %1576 = vmatpush1.msra.mxu0 0.0
    %1577 = vmatprep.mubr.f32.mxu0 0.0
    %1578 = vmatmul.mubr.f32.gmra.mrb[0].mxu0 %v1502
    %v1579 = vpop.f32.mrb[0].mxu0
    %v1580 = vadd.f32 %v1483, %v1579
    %v1581 = vpop.f32.mrb[0].mxu0
    %1582 = vmatprep.mubr.f32.mxu0 0.0
    %1583 = vmatmul.mubr.f32.gmra.mrb[0].mxu0 %v1505
    %v1584 = vpop.f32.mrb[0].mxu0
    %v1585 = vadd.f32 %v1488, %v1584
    %v1586 = vpop.f32.mrb[0].mxu0
    %1587 = vmatprep.mubr.f32.mxu0 0.0
    %1588 = vmatmul.mubr.f32.gmra.mrb[0].mxu0 %v1508
    %v1589 = vpop.f32.mrb[0].mxu0
    %v1590 = vadd.f32 %v1493, %v1589
    %v1591 = vpop.f32.mrb[0].mxu0
    %1592 = vmatprep.mubr.f32.mxu0 0.0
    %1593 = vmatmul.mubr.f32.gmra.mrb[0].mxu0 %v1511
    %v1594 = vpop.f32.mrb[0].mxu0
    %v1595 = vadd.f32 %v1498, %v1594
    %v1596 = vpop.f32.mrb[0].mxu0
    %1597 = vdwg.mxu0
    %v1598 = vmax.f32 %v1580, 0.0
    %v1599 = vmax.f32 %v1585, 0.0
    %v1600 = vmax.f32 %v1590, 0.0
    %v1601 = vmax.f32 %v1595, 0.0
    %v1603 = vsel %vm1360, %v78, 0
    %1605 = vmatprep.subr.mxu0 0.0
    %1606 = vmatpush1.msra.mxu0 %v1598
    %1607 = vmatprep.subr.mxu0 0.0
    %1608 = vmatpush1.msra.mxu0 %v1599
    %1609 = vmatprep.subr.mxu0 0.0
    %1610 = vmatpush1.msra.mxu0 %v1600
    %1611 = vmatprep.subr.mxu0 0.0
    %1612 = vmatpush1.msra.mxu0 %v1601
    %1613 = vmatprep.subr.mxu0 0.0
    %1614 = vmatpush1.msra.mxu0 0.0
    %1615 = vmatprep.subr.mxu0 0.0
    %1616 = vmatpush1.msra.mxu0 0.0
    %1617 = vmatprep.subr.mxu0 0.0
    %1618 = vmatpush1.msra.mxu0 0.0
    %1619 = vmatprep.subr.mxu0 0.0
    %1620 = vmatpush1.msra.mxu0 0.0
    %1621 = vmatprep.subr.mxu0 0.0
    %1622 = vmatpush1.msra.mxu0 0.0
    %1623 = vmatprep.subr.mxu0 0.0
    %1624 = vmatpush1.msra.mxu0 0.0
    %1625 = vmatprep.subr.mxu0 0.0
    %1626 = vmatpush1.msra.mxu0 0.0
    %1627 = vmatprep.subr.mxu0 0.0
    %1628 = vmatpush1.msra.mxu0 0.0
    %1629 = vmatprep.subr.mxu0 0.0
    %1630 = vmatpush1.msra.mxu0 0.0
    %1631 = vmatprep.subr.mxu0 0.0
    %1632 = vmatpush1.msra.mxu0 0.0
    %1633 = vmatprep.subr.mxu0 0.0
    %1634 = vmatpush1.msra.mxu0 0.0
    %1635 = vmatprep.subr.mxu0 0.0
    %1636 = vmatpush1.msra.mxu0 0.0
    %1637 = vmatprep.subr.mxu0 0.0
    %1638 = vmatpush1.msra.mxu0 0.0
    %1639 = vmatprep.subr.mxu0 0.0
    %1640 = vmatpush1.msra.mxu0 0.0
    %1641 = vmatprep.subr.mxu0 0.0
    %1642 = vmatpush1.msra.mxu0 0.0
    %1643 = vmatprep.subr.mxu0 0.0
    %1644 = vmatpush1.msra.mxu0 0.0
    %1645 = vmatprep.subr.mxu0 0.0
    %1646 = vmatpush1.msra.mxu0 0.0
    %1647 = vmatprep.subr.mxu0 0.0
    %1648 = vmatpush1.msra.mxu0 0.0
    %1649 = vmatprep.subr.mxu0 0.0
    %1650 = vmatpush1.msra.mxu0 0.0
    %1651 = vmatprep.subr.mxu0 0.0
    %1652 = vmatpush1.msra.mxu0 0.0
    %1653 = vmatprep.subr.mxu0 0.0
    %1654 = vmatpush1.msra.mxu0 0.0
    %1655 = vmatprep.subr.mxu0 0.0
    %1656 = vmatpush1.msra.mxu0 0.0
    %1657 = vmatprep.subr.mxu0 0.0
    %1658 = vmatpush1.msra.mxu0 0.0
    %1659 = vmatprep.subr.mxu0 0.0
    %1660 = vmatpush1.msra.mxu0 0.0
    %1661 = vmatprep.subr.mxu0 0.0
    %1662 = vmatpush1.msra.mxu0 0.0
    %1663 = vmatprep.subr.mxu0 0.0
    %1664 = vmatpush1.msra.mxu0 0.0
    %1665 = vmatprep.subr.mxu0 0.0
    %1666 = vmatpush1.msra.mxu0 0.0
    %1667 = vmatprep.subr.mxu0 0.0
    %1668 = vmatpush1.msra.mxu0 0.0
    %1669 = vmatprep.mubr.f32.mxu0 0.0
    %1670 = vmatmul.mubr.f32.gmra.mrb[0].mxu0 %v1603
    %v1671 = vpop.f32.mrb[0].mxu0
    %v1672 = vadd.f32 0.0, %v1671
    %v1673 = vpop.f32.mrb[0].mxu0
    %1674 = vdwg.mxu0
    %v1675 = vmul.f32 %v1672, 0.125
    %v1677 = vsel %vm569, %v79, 0
    %v1680 = vsel %vm569, %v80, 0
    %v1683 = vsel %vm569, %v81, 0
    %v1686 = vsel %vm569, %v82, 0
    %v1689 = vsel %vm582, %v1675, 0
    %1691 = vmatprep.subr.mxu0 0.0
    %1692 = vmatpush1.msra.mxu0 %v1689
    %1693 = vmatprep.subr.mxu0 0.0
    %1694 = vmatpush1.msra.mxu0 0.0
    %1695 = vmatprep.subr.mxu0 0.0
    %1696 = vmatpush1.msra.mxu0 0.0
    %1697 = vmatprep.subr.mxu0 0.0
    %1698 = vmatpush1.msra.mxu0 0.0
    %1699 = vmatprep.subr.mxu0 0.0
    %1700 = vmatpush1.msra.mxu0 0.0
    %1701 = vmatprep.subr.mxu0 0.0
    %1702 = vmatpush1.msra.mxu0 0.0
    %1703 = vmatprep.subr.mxu0 0.0
    %1704 = vmatpush1.msra.mxu0 0.0
    %1705 = vmatprep.subr.mxu0 0.0
    %1706 = vmatpush1.msra.mxu0 0.0
    %1707 = vmatprep.subr.mxu0 0.0
    %1708 = vmatpush1.msra.mxu0 0.0
    %1709 = vmatprep.subr.mxu0 0.0
    %1710 = vmatpush1.msra.mxu0 0.0
    %1711 = vmatprep.subr.mxu0 0.0
    %1712 = vmatpush1.msra.mxu0 0.0
    %1713 = vmatprep.subr.mxu0 0.0
    %1714 = vmatpush1.msra.mxu0 0.0
    %1715 = vmatprep.subr.mxu0 0.0
    %1716 = vmatpush1.msra.mxu0 0.0
    %1717 = vmatprep.subr.mxu0 0.0
    %1718 = vmatpush1.msra.mxu0 0.0
    %1719 = vmatprep.subr.mxu0 0.0
    %1720 = vmatpush1.msra.mxu0 0.0
    %1721 = vmatprep.subr.mxu0 0.0
    %1722 = vmatpush1.msra.mxu0 0.0
    %1723 = vmatprep.subr.mxu0 0.0
    %1724 = vmatpush1.msra.mxu0 0.0
    %1725 = vmatprep.subr.mxu0 0.0
    %1726 = vmatpush1.msra.mxu0 0.0
    %1727 = vmatprep.subr.mxu0 0.0
    %1728 = vmatpush1.msra.mxu0 0.0
    %1729 = vmatprep.subr.mxu0 0.0
    %1730 = vmatpush1.msra.mxu0 0.0
    %1731 = vmatprep.subr.mxu0 0.0
    %1732 = vmatpush1.msra.mxu0 0.0
    %1733 = vmatprep.subr.mxu0 0.0
    %1734 = vmatpush1.msra.mxu0 0.0
    %1735 = vmatprep.subr.mxu0 0.0
    %1736 = vmatpush1.msra.mxu0 0.0
    %1737 = vmatprep.subr.mxu0 0.0
    %1738 = vmatpush1.msra.mxu0 0.0
    %1739 = vmatprep.subr.mxu0 0.0
    %1740 = vmatpush1.msra.mxu0 0.0
    %1741 = vmatprep.subr.mxu0 0.0
    %1742 = vmatpush1.msra.mxu0 0.0
    %1743 = vmatprep.subr.mxu0 0.0
    %1744 = vmatpush1.msra.mxu0 0.0
    %1745 = vmatprep.subr.mxu0 0.0
    %1746 = vmatpush1.msra.mxu0 0.0
    %1747 = vmatprep.subr.mxu0 0.0
    %1748 = vmatpush1.msra.mxu0 0.0
    %1749 = vmatprep.subr.mxu0 0.0
    %1750 = vmatpush1.msra.mxu0 0.0
    %1751 = vmatprep.subr.mxu0 0.0
    %1752 = vmatpush1.msra.mxu0 0.0
    %1753 = vmatprep.subr.mxu0 0.0
    %1754 = vmatpush1.msra.mxu0 0.0
    %1755 = vmatprep.mubr.f32.mxu0 0.0
    %1756 = vmatmul.mubr.f32.gmra.mrb[0].mxu0 %v1677
    %v1757 = vpop.f32.mrb[0].mxu0
    %v1758 = vadd.f32 0.0, %v1757
    %v1759 = vpop.f32.mrb[0].mxu0
    %1760 = vmatprep.mubr.f32.mxu0 0.0
    %1761 = vmatmul.mubr.f32.gmra.mrb[0].mxu0 %v1680
    %v1762 = vpop.f32.mrb[0].mxu0
    %v1763 = vadd.f32 0.0, %v1762
    %v1764 = vpop.f32.mrb[0].mxu0
    %1765 = vmatprep.mubr.f32.mxu0 0.0
    %1766 = vmatmul.mubr.f32.gmra.mrb[0].mxu0 %v1683
    %v1767 = vpop.f32.mrb[0].mxu0
    %v1768 = vadd.f32 0.0, %v1767
    %v1769 = vpop.f32.mrb[0].mxu0
    %1770 = vmatprep.mubr.f32.mxu0 0.0
    %1771 = vmatmul.mubr.f32.gmra.mrb[0].mxu0 %v1686
    %v1772 = vpop.f32.mrb[0].mxu0
    %v1773 = vadd.f32 0.0, %v1772
    %v1774 = vpop.f32.mrb[0].mxu0
    %1775 = vdwg.mxu0
    %v1776 = vsub.f32 %v1598, %v1758
    %v1777 = vsub.f32 %v1599, %v1763
    %v1778 = vsub.f32 %v1600, %v1768
    %v1779 = vsub.f32 %v1601, %v1773
    %v1780 = vmul.f32 %v1776, %v1776
    %v1781 = vmul.f32 %v1777, %v1777
    %v1782 = vmul.f32 %v1778, %v1778
    %v1783 = vmul.f32 %v1779, %v1779
    %1784 = vmatprep.subr.mxu0 0.0
    %1785 = vmatpush1.msra.mxu0 %v1780
    %1786 = vmatprep.subr.mxu0 0.0
    %1787 = vmatpush1.msra.mxu0 %v1781
    %1788 = vmatprep.subr.mxu0 0.0
    %1789 = vmatpush1.msra.mxu0 %v1782
    %1790 = vmatprep.subr.mxu0 0.0
    %1791 = vmatpush1.msra.mxu0 %v1783
    %1792 = vmatprep.subr.mxu0 0.0
    %1793 = vmatpush1.msra.mxu0 0.0
    %1794 = vmatprep.subr.mxu0 0.0
    %1795 = vmatpush1.msra.mxu0 0.0
    %1796 = vmatprep.subr.mxu0 0.0
    %1797 = vmatpush1.msra.mxu0 0.0
    %1798 = vmatprep.subr.mxu0 0.0
    %1799 = vmatpush1.msra.mxu0 0.0
    %1800 = vmatprep.subr.mxu0 0.0
    %1801 = vmatpush1.msra.mxu0 0.0
    %1802 = vmatprep.subr.mxu0 0.0
    %1803 = vmatpush1.msra.mxu0 0.0
    %1804 = vmatprep.subr.mxu0 0.0
    %1805 = vmatpush1.msra.mxu0 0.0
    %1806 = vmatprep.subr.mxu0 0.0
    %1807 = vmatpush1.msra.mxu0 0.0
    %1808 = vmatprep.subr.mxu0 0.0
    %1809 = vmatpush1.msra.mxu0 0.0
    %1810 = vmatprep.subr.mxu0 0.0
    %1811 = vmatpush1.msra.mxu0 0.0
    %1812 = vmatprep.subr.mxu0 0.0
    %1813 = vmatpush1.msra.mxu0 0.0
    %1814 = vmatprep.subr.mxu0 0.0
    %1815 = vmatpush1.msra.mxu0 0.0
    %1816 = vmatprep.subr.mxu0 0.0
    %1817 = vmatpush1.msra.mxu0 0.0
    %1818 = vmatprep.subr.mxu0 0.0
    %1819 = vmatpush1.msra.mxu0 0.0
    %1820 = vmatprep.subr.mxu0 0.0
    %1821 = vmatpush1.msra.mxu0 0.0
    %1822 = vmatprep.subr.mxu0 0.0
    %1823 = vmatpush1.msra.mxu0 0.0
    %1824 = vmatprep.subr.mxu0 0.0
    %1825 = vmatpush1.msra.mxu0 0.0
    %1826 = vmatprep.subr.mxu0 0.0
    %1827 = vmatpush1.msra.mxu0 0.0
    %1828 = vmatprep.subr.mxu0 0.0
    %1829 = vmatpush1.msra.mxu0 0.0
    %1830 = vmatprep.subr.mxu0 0.0
    %1831 = vmatpush1.msra.mxu0 0.0
    %1832 = vmatprep.subr.mxu0 0.0
    %1833 = vmatpush1.msra.mxu0 0.0
    %1834 = vmatprep.subr.mxu0 0.0
    %1835 = vmatpush1.msra.mxu0 0.0
    %1836 = vmatprep.subr.mxu0 0.0
    %1837 = vmatpush1.msra.mxu0 0.0
    %1838 = vmatprep.subr.mxu0 0.0
    %1839 = vmatpush1.msra.mxu0 0.0
    %1840 = vmatprep.subr.mxu0 0.0
    %1841 = vmatpush1.msra.mxu0 0.0
    %1842 = vmatprep.subr.mxu0 0.0
    %1843 = vmatpush1.msra.mxu0 0.0
    %1844 = vmatprep.subr.mxu0 0.0
    %1845 = vmatpush1.msra.mxu0 0.0
    %1846 = vmatprep.subr.mxu0 0.0
    %1847 = vmatpush1.msra.mxu0 0.0
    %1848 = vmatprep.mubr.f32.mxu0 0.0
    %1849 = vmatmul.mubr.f32.gmra.mrb[0].mxu0 %v1603
    %v1850 = vpop.f32.mrb[0].mxu0
    %v1851 = vadd.f32 0.0, %v1850
    %v1852 = vpop.f32.mrb[0].mxu0
    %1853 = vdwg.mxu0
    %v1854 = vmul.f32 %v1851, 0.125
    %v1855 = vadd.f32 %v1854, 1e-05
    %v1856 = vrsqrt.pop %v1855
    %v1858 = vsel %vm582, %v1856, 0
    %1860 = vmatprep.subr.mxu0 0.0
    %1861 = vmatpush1.msra.mxu0 %v1858
    %1862 = vmatprep.subr.mxu0 0.0
    %1863 = vmatpush1.msra.mxu0 0.0
    %1864 = vmatprep.subr.mxu0 0.0
    %1865 = vmatpush1.msra.mxu0 0.0
    %1866 = vmatprep.subr.mxu0 0.0
    %1867 = vmatpush1.msra.mxu0 0.0
    %1868 = vmatprep.subr.mxu0 0.0
    %1869 = vmatpush1.msra.mxu0 0.0
    %1870 = vmatprep.subr.mxu0 0.0
    %1871 = vmatpush1.msra.mxu0 0.0
    %1872 = vmatprep.subr.mxu0 0.0
    %1873 = vmatpush1.msra.mxu0 0.0
    %1874 = vmatprep.subr.mxu0 0.0
    %1875 = vmatpush1.msra.mxu0 0.0
    %1876 = vmatprep.subr.mxu0 0.0
    %1877 = vmatpush1.msra.mxu0 0.0
    %1878 = vmatprep.subr.mxu0 0.0
    %1879 = vmatpush1.msra.mxu0 0.0
    %1880 = vmatprep.subr.mxu0 0.0
    %1881 = vmatpush1.msra.mxu0 0.0
    %1882 = vmatprep.subr.mxu0 0.0
    %1883 = vmatpush1.msra.mxu0 0.0
    %1884 = vmatprep.subr.mxu0 0.0
    %1885 = vmatpush1.msra.mxu0 0.0
    %1886 = vmatprep.subr.mxu0 0.0
    %1887 = vmatpush1.msra.mxu0 0.0
    %1888 = vmatprep.subr.mxu0 0.0
    %1889 = vmatpush1.msra.mxu0 0.0
    %1890 = vmatprep.subr.mxu0 0.0
    %1891 = vmatpush1.msra.mxu0 0.0
    %1892 = vmatprep.subr.mxu0 0.0
    %1893 = vmatpush1.msra.mxu0 0.0
    %1894 = vmatprep.subr.mxu0 0.0
    %1895 = vmatpush1.msra.mxu0 0.0
    %1896 = vmatprep.subr.mxu0 0.0
    %1897 = vmatpush1.msra.mxu0 0.0
    %1898 = vmatprep.subr.mxu0 0.0
    %1899 = vmatpush1.msra.mxu0 0.0
    %1900 = vmatprep.subr.mxu0 0.0
    %1901 = vmatpush1.msra.mxu0 0.0
    %1902 = vmatprep.subr.mxu0 0.0
    %1903 = vmatpush1.msra.mxu0 0.0
    %1904 = vmatprep.subr.mxu0 0.0
    %1905 = vmatpush1.msra.mxu0 0.0
    %1906 = vmatprep.subr.mxu0 0.0
    %1907 = vmatpush1.msra.mxu0 0.0
    %1908 = vmatprep.subr.mxu0 0.0
    %1909 = vmatpush1.msra.mxu0 0.0
    %1910 = vmatprep.subr.mxu0 0.0
    %1911 = vmatpush1.msra.mxu0 0.0
    %1912 = vmatprep.subr.mxu0 0.0
    %1913 = vmatpush1.msra.mxu0 0.0
    %1914 = vmatprep.subr.mxu0 0.0
    %1915 = vmatpush1.msra.mxu0 0.0
    %1916 = vmatprep.subr.mxu0 0.0
    %1917 = vmatpush1.msra.mxu0 0.0
    %1918 = vmatprep.subr.mxu0 0.0
    %1919 = vmatpush1.msra.mxu0 0.0
    %1920 = vmatprep.subr.mxu0 0.0
    %1921 = vmatpush1.msra.mxu0 0.0
    %1922 = vmatprep.subr.mxu0 0.0
    %1923 = vmatpush1.msra.mxu0 0.0
    %1924 = vmatprep.mubr.f32.mxu0 0.0
    %1925 = vmatmul.mubr.f32.gmra.mrb[0].mxu0 %v1677
    %v1926 = vpop.f32.mrb[0].mxu0
    %v1927 = vadd.f32 0.0, %v1926
    %v1928 = vpop.f32.mrb[0].mxu0
    %1929 = vmatprep.mubr.f32.mxu0 0.0
    %1930 = vmatmul.mubr.f32.gmra.mrb[0].mxu0 %v1680
    %v1931 = vpop.f32.mrb[0].mxu0
    %v1932 = vadd.f32 0.0, %v1931
    %v1933 = vpop.f32.mrb[0].mxu0
    %1934 = vmatprep.mubr.f32.mxu0 0.0
    %1935 = vmatmul.mubr.f32.gmra.mrb[0].mxu0 %v1683
    %v1936 = vpop.f32.mrb[0].mxu0
    %v1937 = vadd.f32 0.0, %v1936
    %v1938 = vpop.f32.mrb[0].mxu0
    %1939 = vmatprep.mubr.f32.mxu0 0.0
    %1940 = vmatmul.mubr.f32.gmra.mrb[0].mxu0 %v1686
    %v1941 = vpop.f32.mrb[0].mxu0
    %v1942 = vadd.f32 0.0, %v1941
    %v1943 = vpop.f32.mrb[0].mxu0
    %1944 = vdwg.mxu0
    %v1945 = vmul.f32 %v1776, %v1927
    %v1946 = vmul.f32 %v1777, %v1932
    %v1947 = vmul.f32 %v1778, %v1937
    %v1948 = vmul.f32 %v1779, %v1942
    %1950 = vset.pattern.permute.xlu0 0
    %1951 = vperm.xlu0 %1950, %v65
    %v1952 = vpop.permute.xlu0 %1951
    %1955 = vset.pattern.permute.xlu0 0
    %1956 = vperm.xlu0 %1955, %v66
    %v1957 = vpop.permute.xlu0 %1956
    %1960 = vset.pattern.permute.xlu0 0
    %1961 = vperm.xlu0 %1960, %v67
    %v1962 = vpop.permute.xlu0 %1961
    %1965 = vset.pattern.permute.xlu0 0
    %1966 = vperm.xlu0 %1965, %v68
    %v1967 = vpop.permute.xlu0 %1966
    %v1969 = vmul.f32 %v1945, %v1952
    %v1970 = vmul.f32 %v1946, %v1957
    %v1971 = vmul.f32 %v1947, %v1962
    %v1972 = vmul.f32 %v1948, %v1967
    %1974 = vset.pattern.permute.xlu0 0
    %1975 = vperm.xlu0 %1974, %v69
    %v1976 = vpop.permute.xlu0 %1975
    %1979 = vset.pattern.permute.xlu0 0
    %1980 = vperm.xlu0 %1979, %v70
    %v1981 = vpop.permute.xlu0 %1980
    %1984 = vset.pattern.permute.xlu0 0
    %1985 = vperm.xlu0 %1984, %v71
    %v1986 = vpop.permute.xlu0 %1985
    %1989 = vset.pattern.permute.xlu0 0
    %1990 = vperm.xlu0 %1989, %v72
    %v1991 = vpop.permute.xlu0 %1990
    %v1993 = vadd.f32 %v1969, %v1976
    %v1994 = vadd.f32 %v1970, %v1981
    %v1995 = vadd.f32 %v1971, %v1986
    %v1996 = vadd.f32 %v1972, %v1991
    %1997 = vst [vmem:[#allocation4] sm:$0xff] %v1993
    %1998 = vst [vmem:[#allocation4 + $0x8] sm:$0xff] %v1994
    %1999 = vst [vmem:[#allocation4 + $0x10] sm:$0xff] %v1995
    %2000 = vst [vmem:[#allocation4 + $0x18] sm:$0xff] %v1996
    // Predicated region
    $region43: #{tpu_custom_call.1} parent=1 // pred_check
      _
    $region44: #{tpu_custom_call.1} parent=1 // pred_check_branch
      %2002 = sbr.rel (0) target = $region46
    $region45: #{tpu_custom_call.1} parent=1 // pred_region
      %s2004 = ssub.s32 512, 512
      %2005 = vsyncadd [#allocation5], %s2004
      %s2006 = sshll.u32 [#allocation4], 4
      %s2007 = int_to_ptr.vmem [resolvable:$true] %s2006
      %2012 = dma.vmem_to_hbm [thread:$0]  %s2007, 512, %s5, [#allocation5], 128, 128, 8
    $region46: #{tpu_custom_call.1} parent=1 // pred_fallthru
      _
    // Predicated region
    $region47: #{tpu_custom_call.1} parent=1 // pred_check
      _
    $region48: #{tpu_custom_call.1} parent=1 // pred_check_branch
      %2014 = sbr.rel (0) target = $region50
    $region49: #{tpu_custom_call.1} parent=1 // pred_region
      %2015 = dma.done [#allocation5], 512
    $region50: #{tpu_custom_call.1} parent=1 // pred_fallthru
      _
    %2016 = vsyncpa [#allocation5], 1

</llo_original>
